<compile_context>
chip_gen: v7x
topology: tpu7x:2x2x1
jax: 0.10.0
libtpu: 0.0.40
codegen_flags: <defaults>
</compile_context>

<pallas_src>
import jax
import jax.numpy as jnp
from jax.experimental import pallas as pl
from jax.experimental.pallas import tpu as pltpu


def _ceil_div(a, b):
    return -(-a // b)


def _round_up(a, b):
    return _ceil_div(a, b) * b


def _round_down(a, b):
    return (a // b) * b


def _vmem_limit_bytes():
    """Generation-aware scoped-VMEM limit: half the physical VMEM, capped at 64 MiB.

    v5e/v6e (128 MiB) -> 64 MiB, v7x (64 MiB) -> 32 MiB, unknown -> 32 MiB.
    """
    try:
        cap = int(pltpu.get_tpu_info().vmem_capacity_bytes)
    except Exception:
        cap = 64 * 1024 * 1024
    return int(min(cap // 2, 64 * 1024 * 1024))


def _pick_tile_m(m, n_imgs, cin, cout, itemsize, aux_bytes, vmem_limit):
    """Pixel-tile width for the stride==1 path (multiple of 128 or the full extent).

    Sized so that 2 x (in_tile + out_tile) + 2 x aux stays under ~80% of the
    per-generation VMEM limit (BlockSpec double-buffers every operand).
    """
    usable = (vmem_limit * 4) // 5 - 2 * aux_bytes
    per_pixel = (cin + cout) * itemsize
    tm = max(128, _round_down(usable // (2 * per_pixel), 128))
    if n_imgs == 1 and m > 128:
        # Keep >= 2 grid programs so both v7x TensorCores get work.
        tm = min(tm, _round_up(_ceil_div(m, 2), 128))
    return m if m <= tm else tm


def _pick_tile_rows(ho, n_imgs, cin, cout, w, wo, stride, itemsize, aux_bytes,
                    vmem_limit):
    """Output-row tile for the stride>1 path (multiple of 8), or None to fall back."""
    if ho < 8:
        return None                      # can't satisfy the (8,128) block rule cleanly
    usable = (vmem_limit * 4) // 5 - 2 * aux_bytes
    per_out_row = (cin * stride * w + cout * wo) * itemsize
    tr = usable // (2 * per_out_row)
    tr = max(8, _round_down(tr, 8))
    tr = min(tr, 64)                      # bounds the unrolled per-row loop
    tr = min(tr, _round_down(ho, 8))
    if n_imgs == 1 and tr >= ho and ho >= 16:
        tr = max(8, _round_up(_ceil_div(ho, 2), 8))   # >= 2 programs for v7x
    return tr


def _conv1x1_flat_kernel(x_ref, w_ref, shift_ref, o_ref):
    # x_ref: (Cin, TM) lane-dense pixels, w_ref: (Cout, Cin) BN-folded weight,
    # shift_ref: (Cout, 1) folded BN shift, o_ref: (Cout, TM).
    y = jnp.dot(w_ref[...], x_ref[...], preferred_element_type=jnp.float32)
    o_ref[...] = jnp.maximum(y + shift_ref[...], 0.0).astype(o_ref.dtype)


def _make_conv1x1_strided_kernel(stride, tr):
    def kernel(x_ref, w_ref, shift_ref, sel_ref, o_ref):
        # x_ref:    (Cin, TR*stride, W)  band of input rows (full width)
        # w_ref:    (Cout, Cin)          BN-folded weight
        # shift_ref:(Cout, 1)            folded BN shift
        # sel_ref:  (W, Wo)              0/1 column-selection matrix
        # o_ref:    (Cout, TR, Wo)
        w = w_ref[...]
        shift = shift_ref[...]
        sel = sel_ref[...]
        for j in range(tr):
            row = x_ref[:, j * stride, :]                                   # (Cin, W)
            cols = jnp.dot(row, sel, preferred_element_type=jnp.float32)    # (Cin, Wo)
            y = jnp.dot(w, cols.astype(w.dtype),
                        preferred_element_type=jnp.float32)                 # (Cout, Wo)
            o_ref[:, j, :] = jnp.maximum(y + shift, 0.0).astype(o_ref.dtype)
    return kernel


def conv1x1_bn_relu(x_nchw, w_oi, bn_gamma, bn_beta, bn_mean, bn_var, stride, eps=1e-5):
    """1x1 conv (no bias, stride s) + BatchNorm (eval stats) + ReLU via Pallas."""
    N, Cin, H, W = x_nchw.shape
    Cout = w_oi.shape[0]
    Ho = (H - 1) // stride + 1
    Wo = (W - 1) // stride + 1

    # Fold BN into the conv: scale into the weight, shift applied in-kernel.
    scale = bn_gamma.astype(jnp.float32) / jnp.sqrt(bn_var.astype(jnp.float32) + eps)
    w_scaled = w_oi.astype(jnp.float32) * scale[:, None]                 # (Cout, Cin)
    shift = (bn_beta.astype(jnp.float32)
             - bn_mean.astype(jnp.float32) * scale).reshape(Cout, 1)     # (Cout, 1), f32
    # bf16 activations -> bf16 weight so the MXU runs at native rate (f32 accumulate).
    w_dtype = jnp.bfloat16 if x_nchw.dtype == jnp.bfloat16 else jnp.float32
    w_scaled = w_scaled.astype(w_dtype)

    itemsize = x_nchw.dtype.itemsize
    vmem_limit = _vmem_limit_bytes()
    compiler_params = pltpu.CompilerParams(
        dimension_semantics=("parallel", "parallel"),
        vmem_limit_bytes=vmem_limit,
    )

    if stride > 1:
        aux_bytes = (w_scaled.size * w_scaled.dtype.itemsize
                     + shift.size * 4 + W * Wo * itemsize)
        tr = _pick_tile_rows(Ho, N, Cin, Cout, W, Wo, stride, itemsize, aux_bytes,
                             vmem_limit)
        if tr is not None:
            # Stride folded into the DMA: grid over output-row tiles; the input
            # block brings in the matching band of input rows directly from HBM.
            sel = (jnp.arange(W)[:, None]
                   == jnp.arange(Wo)[None, :] * stride).astype(x_nchw.dtype)
            kernel = _make_conv1x1_strided_kernel(stride, tr)
            return pl.pallas_call(
                kernel,
                out_shape=jax.ShapeDtypeStruct((N, Cout, Ho, Wo), x_nchw.dtype),
                grid=(N, pl.cdiv(Ho, tr)),
                in_specs=[
                    pl.BlockSpec((pl.Squeezed(), Cin, tr * stride, W),
                                 lambda n, r: (n, 0, r, 0)),
                    pl.BlockSpec((Cout, Cin), lambda n, r: (0, 0)),
                    pl.BlockSpec((Cout, 1), lambda n, r: (0, 0)),
                    pl.BlockSpec((W, Wo), lambda n, r: (0, 0)),
                ],
                out_specs=pl.BlockSpec((pl.Squeezed(), Cout, tr, Wo),
                                       lambda n, r: (n, 0, r, 0)),
                compiler_params=compiler_params,
            )(x_nchw, w_scaled, shift, sel)
        # Tiny spatial extents (Ho < 8): fall back to a wrapper-side strided slice.
        # TODO(synk): cover this case with a manual strided DMA as well.
        x_nchw = x_nchw[:, :, ::stride, ::stride]

    # stride == 1 (or tiny-shape fallback): flat lane-dense pixel axis.
    M = Ho * Wo
    x3d = x_nchw.reshape(N, Cin, M)                # contiguous reshape: no copy
    aux_bytes = w_scaled.size * w_scaled.dtype.itemsize + shift.size * 4
    tm = _pick_tile_m(M, N, Cin, Cout, itemsize, aux_bytes, vmem_limit)
    out3d = pl.pallas_call(
        _conv1x1_flat_kernel,
        out_shape=jax.ShapeDtypeStruct((N, Cout, M), x_nchw.dtype),
        grid=(N, pl.cdiv(M, tm)),
        in_specs=[
            pl.BlockSpec((pl.Squeezed(), Cin, tm), lambda n, j: (n, 0, j)),
            pl.BlockSpec((Cout, Cin), lambda n, j: (0, 0)),
            pl.BlockSpec((Cout, 1), lambda n, j: (0, 0)),
        ],
        out_specs=pl.BlockSpec((pl.Squeezed(), Cout, tm), lambda n, j: (n, 0, j)),
        compiler_params=compiler_params,
    )(x3d, w_scaled, shift)
    return out3d.reshape(N, Cout, Ho, Wo)          # free reshape: already NCHW


class IdentityPallas:
    """JAX/Pallas port of the FBNet `Identity` block (eval-mode BN semantics)."""

    def __init__(self, genotype, input_size, in_channels, out_channels, stride, key):
        self.in_channels = in_channels
        self.out_channels = out_channels
        self.stride = stride
        self.has_conv = (in_channels != out_channels) or (stride != 1)
        if self.has_conv:
            # Conv2d(in, out, k=1, stride, pad=0, bias=False)
            # kaiming_normal_(mode='fan_out', nonlinearity='relu'): std = sqrt(2/fan_out)
            std = (2.0 / out_channels) ** 0.5
            self.weight = std * jax.random.normal(
                key, (out_channels, in_channels, 1, 1), dtype=jnp.float32
            )
            # BatchNorm2d default running stats (eval semantics): gamma=1, beta=0, mean=0, var=1
            self.bn_gamma = jnp.ones((out_channels,), jnp.float32)
            self.bn_beta = jnp.zeros((out_channels,), jnp.float32)
            self.bn_mean = jnp.zeros((out_channels,), jnp.float32)
            self.bn_var = jnp.ones((out_channels,), jnp.float32)

    def __call__(self, x):
        if not self.has_conv:
            # Pure identity: no compute hot path to put in a kernel.
            return x
        w_oi = self.weight.reshape(self.out_channels, self.in_channels)  # 1x1 kernel
        return conv1x1_bn_relu(
            x, w_oi, self.bn_gamma, self.bn_beta, self.bn_mean, self.bn_var, self.stride
        )


if __name__ == "__main__":
    key = jax.random.PRNGKey(0)
    k_x1, k_w1, k_x2, k_w2, k_x3, k_w3, k_x5, k_w5 = jax.random.split(key, 8)

    def reference(x, block, stride):
        w2d = block.weight.reshape(block.out_channels, block.in_channels)
        xs = x.astype(jnp.float32)[:, :, ::stride, ::stride]
        y = jnp.einsum("nchw,oc->nohw", xs, w2d,
                       precision=jax.lax.Precision.HIGHEST)
        y = y / jnp.sqrt(1.0 + 1e-5)               # BN with default running stats
        return jnp.maximum(y, 0.0)

    # 1) stride-2 downsample -> DMA-folded strided path (Ho = 8, one row tile/image).
    x1 = jax.random.normal(k_x1, (2, 4, 16, 16), dtype=jnp.float32)
    b1 = IdentityPallas(None, 16, 4, 8, 2, k_w1)
    y1 = jax.block_until_ready(b1(x1))
    assert y1.shape == (2, 8, 8, 8)
    assert jnp.allclose(y1, reference(x1, b1, 2), atol=2e-2, rtol=2e-2)

    # 2) stride-1, in != out -> flat lane-dense path.
    x2 = jax.random.normal(k_x2, (2, 16, 16, 16), dtype=jnp.float32)
    b2 = IdentityPallas(None, 16, 16, 32, 1, k_w2)
    y2 = jax.block_until_ready(b2(x2))
    assert y2.shape == (2, 32, 16, 16)
    assert jnp.allclose(y2, reference(x2, b2, 1), atol=2e-2, rtol=2e-2)

    # 3) larger channel count on the MXU.
    x3 = jax.random.normal(k_x3, (2, 64, 8, 8), dtype=jnp.float32)
    b3 = IdentityPallas(None, 8, 64, 128, 1, k_w3)
    y3 = jax.block_until_ready(b3(x3))
    assert y3.shape == (2, 128, 8, 8)
    assert jnp.allclose(y3, reference(x3, b3, 1), atol=2e-2, rtol=2e-2)

    # 4) passthrough branch (in == out, stride == 1): pure identity.
    b4 = IdentityPallas(None, 16, 4, 4, 1, k_w1)
    y4 = jax.block_until_ready(b4(x1))
    assert jnp.array_equal(y4, x1)

    # 5) stride-2, N == 1, several row tiles (exercises the >=2-program split).
    x5 = jax.random.normal(k_x5, (1, 8, 64, 48), dtype=jnp.float32)
    b5 = IdentityPallas(None, 64, 8, 16, 2, k_w5)
    y5 = jax.block_until_ready(b5(x5))
    assert y5.shape == (1, 16, 32, 24)
    assert jnp.allclose(y5, reference(x5, b5, 2), atol=2e-2, rtol=2e-2)

    # 6) bf16 activations -> bf16 folded weight, f32 accumulate, bf16 store.
    x6 = x2.astype(jnp.bfloat16)
    y6 = jax.block_until_ready(b2(x6))
    assert y6.dtype == jnp.bfloat16
    assert jnp.allclose(y6.astype(jnp.float32), reference(x6, b2, 1),
                        atol=3e-2, rtol=3e-2)

    print("KERNEL_OK")
</pallas_src>

<mosaic_0001>
module attributes {stable_mosaic.version = 11 : i64} {
  func.func @kernel(%arg0: i32, %arg1: i32, %arg2: memref<1x4x16x16xf32, #tpu.memory_space<vmem>>, %arg3: memref<8x4xf32, #tpu.memory_space<vmem>>, %arg4: memref<8x1xf32, #tpu.memory_space<vmem>>, %arg5: memref<16x8xf32, #tpu.memory_space<vmem>>, %arg6: memref<1x8x8x8xf32, #tpu.memory_space<vmem>>) attributes {dimension_semantics = [#tpu.dimension_semantics<parallel>, #tpu.dimension_semantics<parallel>], iteration_bounds = array<i64: 2, 1>, scalar_prefetch = 0 : i64, scratch_operands = 0 : i64, tpu.core_type = #tpu.core_type<tc>, window_params = [{transform_indices = @transform_0, window_bounds = array<i64: 1, 4, 16, 16>}, {pipeline_mode = #tpu.pipeline_mode<synchronous>, transform_indices = @transform_1, window_bounds = array<i64: 8, 4>}, {pipeline_mode = #tpu.pipeline_mode<synchronous>, transform_indices = @transform_2, window_bounds = array<i64: 8, 1>}, {pipeline_mode = #tpu.pipeline_mode<synchronous>, transform_indices = @transform_3, window_bounds = array<i64: 16, 8>}, {transform_indices = @transform_4, window_bounds = array<i64: 1, 8, 8, 8>}]} {
    %c0 = arith.constant 0 : index
    %c0_0 = arith.constant 0 : index
    %0 = vector.load %arg3[%c0, %c0_0] : memref<8x4xf32, #tpu.memory_space<vmem>>, vector<8x4xf32>
    %c0_1 = arith.constant 0 : index
    %c0_2 = arith.constant 0 : index
    %1 = vector.load %arg4[%c0_1, %c0_2] : memref<8x1xf32, #tpu.memory_space<vmem>>, vector<8x1xf32>
    %c0_3 = arith.constant 0 : index
    %c0_4 = arith.constant 0 : index
    %2 = vector.load %arg5[%c0_3, %c0_4] : memref<16x8xf32, #tpu.memory_space<vmem>>, vector<16x8xf32>
    %c0_5 = arith.constant 0 : index
    %c0_6 = arith.constant 0 : index
    %c0_7 = arith.constant 0 : index
    %c0_8 = arith.constant 0 : index
    %3 = vector.load %arg2[%c0_5, %c0_6, %c0_7, %c0_8] : memref<1x4x16x16xf32, #tpu.memory_space<vmem>>, vector<1x4x1x16xf32>
    %4 = vector.shape_cast %3 : vector<1x4x1x16xf32> to vector<4x16xf32>
    %cst = arith.constant dense<0.000000e+00> : vector<4x8xf32>
    %5 = tpu.matmul %4, %2, %cst {dimension_numbers = #tpu.dot_dimension_numbers<[1], [0], [0], [1], [0, 0, 1, 1], [], []>} : vector<4x16xf32>, vector<16x8xf32>, vector<4x8xf32> -> vector<4x8xf32>
    %cst_9 = arith.constant dense<0.000000e+00> : vector<8x8xf32>
    %6 = tpu.matmul %0, %5, %cst_9 {dimension_numbers = #tpu.dot_dimension_numbers<[1], [0], [0], [1], [0, 0, 1, 1], [], []>} : vector<8x4xf32>, vector<4x8xf32>, vector<8x8xf32> -> vector<8x8xf32>
    %7 = vector.broadcast %1 : vector<8x1xf32> to vector<8x8xf32>
    %8 = arith.addf %6, %7 : vector<8x8xf32>
    %cst_10 = arith.constant 0.000000e+00 : f32
    %9 = vector.broadcast %cst_10 : f32 to vector<8x8xf32>
    %10 = arith.maximumf %8, %9 : vector<8x8xf32>
    %c0_11 = arith.constant 0 : index
    %c0_12 = arith.constant 0 : index
    %c0_13 = arith.constant 0 : index
    %c0_14 = arith.constant 0 : index
    %11 = vector.load %arg6[%c0_11, %c0_12, %c0_13, %c0_14] : memref<1x8x8x8xf32, #tpu.memory_space<vmem>>, vector<1x8x1x8xf32>
    %12 = vector.shape_cast %11 : vector<1x8x1x8xf32> to vector<8x8xf32>
    %13 = vector.shape_cast %10 : vector<8x8xf32> to vector<1x8x1x8xf32>
    tpu.vector_store %arg6[%c0_11, %c0_12, %c0_13, %c0_14], %13 {strides = array<i32>} : memref<1x8x8x8xf32, #tpu.memory_space<vmem>>, vector<1x8x1x8xf32>,
    %c0_15 = arith.constant 0 : index
    %c0_16 = arith.constant 0 : index
    %c2 = arith.constant 2 : index
    %c0_17 = arith.constant 0 : index
    %14 = vector.load %arg2[%c0_15, %c0_16, %c2, %c0_17] : memref<1x4x16x16xf32, #tpu.memory_space<vmem>>, vector<1x4x1x16xf32>
    %15 = vector.shape_cast %14 : vector<1x4x1x16xf32> to vector<4x16xf32>
    %cst_18 = arith.constant dense<0.000000e+00> : vector<4x8xf32>
    %16 = tpu.matmul %15, %2, %cst_18 {dimension_numbers = #tpu.dot_dimension_numbers<[1], [0], [0], [1], [0, 0, 1, 1], [], []>} : vector<4x16xf32>, vector<16x8xf32>, vector<4x8xf32> -> vector<4x8xf32>
    %cst_19 = arith.constant dense<0.000000e+00> : vector<8x8xf32>
    %17 = tpu.matmul %0, %16, %cst_19 {dimension_numbers = #tpu.dot_dimension_numbers<[1], [0], [0], [1], [0, 0, 1, 1], [], []>} : vector<8x4xf32>, vector<4x8xf32>, vector<8x8xf32> -> vector<8x8xf32>
    %18 = vector.broadcast %1 : vector<8x1xf32> to vector<8x8xf32>
    %19 = arith.addf %17, %18 : vector<8x8xf32>
    %cst_20 = arith.constant 0.000000e+00 : f32
    %20 = vector.broadcast %cst_20 : f32 to vector<8x8xf32>
    %21 = arith.maximumf %19, %20 : vector<8x8xf32>
    %c0_21 = arith.constant 0 : index
    %c0_22 = arith.constant 0 : index
    %c1 = arith.constant 1 : index
    %c0_23 = arith.constant 0 : index
    %22 = vector.load %arg6[%c0_21, %c0_22, %c1, %c0_23] : memref<1x8x8x8xf32, #tpu.memory_space<vmem>>, vector<1x8x1x8xf32>
    %23 = vector.shape_cast %22 : vector<1x8x1x8xf32> to vector<8x8xf32>
    %24 = vector.shape_cast %21 : vector<8x8xf32> to vector<1x8x1x8xf32>
    tpu.vector_store %arg6[%c0_21, %c0_22, %c1, %c0_23], %24 {strides = array<i32>} : memref<1x8x8x8xf32, #tpu.memory_space<vmem>>, vector<1x8x1x8xf32>,
    %c0_24 = arith.constant 0 : index
    %c0_25 = arith.constant 0 : index
    %c4 = arith.constant 4 : index
    %c0_26 = arith.constant 0 : index
    %25 = vector.load %arg2[%c0_24, %c0_25, %c4, %c0_26] : memref<1x4x16x16xf32, #tpu.memory_space<vmem>>, vector<1x4x1x16xf32>
    %26 = vector.shape_cast %25 : vector<1x4x1x16xf32> to vector<4x16xf32>
    %cst_27 = arith.constant dense<0.000000e+00> : vector<4x8xf32>
    %27 = tpu.matmul %26, %2, %cst_27 {dimension_numbers = #tpu.dot_dimension_numbers<[1], [0], [0], [1], [0, 0, 1, 1], [], []>} : vector<4x16xf32>, vector<16x8xf32>, vector<4x8xf32> -> vector<4x8xf32>
    %cst_28 = arith.constant dense<0.000000e+00> : vector<8x8xf32>
    %28 = tpu.matmul %0, %27, %cst_28 {dimension_numbers = #tpu.dot_dimension_numbers<[1], [0], [0], [1], [0, 0, 1, 1], [], []>} : vector<8x4xf32>, vector<4x8xf32>, vector<8x8xf32> -> vector<8x8xf32>
    %29 = vector.broadcast %1 : vector<8x1xf32> to vector<8x8xf32>
    %30 = arith.addf %28, %29 : vector<8x8xf32>
    %cst_29 = arith.constant 0.000000e+00 : f32
    %31 = vector.broadcast %cst_29 : f32 to vector<8x8xf32>
    %32 = arith.maximumf %30, %31 : vector<8x8xf32>
    %c0_30 = arith.constant 0 : index
    %c0_31 = arith.constant 0 : index
    %c2_32 = arith.constant 2 : index
    %c0_33 = arith.constant 0 : index
    %33 = vector.load %arg6[%c0_30, %c0_31, %c2_32, %c0_33] : memref<1x8x8x8xf32, #tpu.memory_space<vmem>>, vector<1x8x1x8xf32>
    %34 = vector.shape_cast %33 : vector<1x8x1x8xf32> to vector<8x8xf32>
    %35 = vector.shape_cast %32 : vector<8x8xf32> to vector<1x8x1x8xf32>
    tpu.vector_store %arg6[%c0_30, %c0_31, %c2_32, %c0_33], %35 {strides = array<i32>} : memref<1x8x8x8xf32, #tpu.memory_space<vmem>>, vector<1x8x1x8xf32>,
    %c0_34 = arith.constant 0 : index
    %c0_35 = arith.constant 0 : index
    %c6 = arith.constant 6 : index
    %c0_36 = arith.constant 0 : index
    %36 = vector.load %arg2[%c0_34, %c0_35, %c6, %c0_36] : memref<1x4x16x16xf32, #tpu.memory_space<vmem>>, vector<1x4x1x16xf32>
    %37 = vector.shape_cast %36 : vector<1x4x1x16xf32> to vector<4x16xf32>
    %cst_37 = arith.constant dense<0.000000e+00> : vector<4x8xf32>
    %38 = tpu.matmul %37, %2, %cst_37 {dimension_numbers = #tpu.dot_dimension_numbers<[1], [0], [0], [1], [0, 0, 1, 1], [], []>} : vector<4x16xf32>, vector<16x8xf32>, vector<4x8xf32> -> vector<4x8xf32>
    %cst_38 = arith.constant dense<0.000000e+00> : vector<8x8xf32>
    %39 = tpu.matmul %0, %38, %cst_38 {dimension_numbers = #tpu.dot_dimension_numbers<[1], [0], [0], [1], [0, 0, 1, 1], [], []>} : vector<8x4xf32>, vector<4x8xf32>, vector<8x8xf32> -> vector<8x8xf32>
    %40 = vector.broadcast %1 : vector<8x1xf32> to vector<8x8xf32>
    %41 = arith.addf %39, %40 : vector<8x8xf32>
    %cst_39 = arith.constant 0.000000e+00 : f32
    %42 = vector.broadcast %cst_39 : f32 to vector<8x8xf32>
    %43 = arith.maximumf %41, %42 : vector<8x8xf32>
    %c0_40 = arith.constant 0 : index
    %c0_41 = arith.constant 0 : index
    %c3 = arith.constant 3 : index
    %c0_42 = arith.constant 0 : index
    %44 = vector.load %arg6[%c0_40, %c0_41, %c3, %c0_42] : memref<1x8x8x8xf32, #tpu.memory_space<vmem>>, vector<1x8x1x8xf32>
    %45 = vector.shape_cast %44 : vector<1x8x1x8xf32> to vector<8x8xf32>
    %46 = vector.shape_cast %43 : vector<8x8xf32> to vector<1x8x1x8xf32>
    tpu.vector_store %arg6[%c0_40, %c0_41, %c3, %c0_42], %46 {strides = array<i32>} : memref<1x8x8x8xf32, #tpu.memory_space<vmem>>, vector<1x8x1x8xf32>,
    %c0_43 = arith.constant 0 : index
    %c0_44 = arith.constant 0 : index
    %c8 = arith.constant 8 : index
    %c0_45 = arith.constant 0 : index
    %47 = vector.load %arg2[%c0_43, %c0_44, %c8, %c0_45] : memref<1x4x16x16xf32, #tpu.memory_space<vmem>>, vector<1x4x1x16xf32>
    %48 = vector.shape_cast %47 : vector<1x4x1x16xf32> to vector<4x16xf32>
    %cst_46 = arith.constant dense<0.000000e+00> : vector<4x8xf32>
    %49 = tpu.matmul %48, %2, %cst_46 {dimension_numbers = #tpu.dot_dimension_numbers<[1], [0], [0], [1], [0, 0, 1, 1], [], []>} : vector<4x16xf32>, vector<16x8xf32>, vector<4x8xf32> -> vector<4x8xf32>
    %cst_47 = arith.constant dense<0.000000e+00> : vector<8x8xf32>
    %50 = tpu.matmul %0, %49, %cst_47 {dimension_numbers = #tpu.dot_dimension_numbers<[1], [0], [0], [1], [0, 0, 1, 1], [], []>} : vector<8x4xf32>, vector<4x8xf32>, vector<8x8xf32> -> vector<8x8xf32>
    %51 = vector.broadcast %1 : vector<8x1xf32> to vector<8x8xf32>
    %52 = arith.addf %50, %51 : vector<8x8xf32>
    %cst_48 = arith.constant 0.000000e+00 : f32
    %53 = vector.broadcast %cst_48 : f32 to vector<8x8xf32>
    %54 = arith.maximumf %52, %53 : vector<8x8xf32>
    %c0_49 = arith.constant 0 : index
    %c0_50 = arith.constant 0 : index
    %c4_51 = arith.constant 4 : index
    %c0_52 = arith.constant 0 : index
    %55 = vector.load %arg6[%c0_49, %c0_50, %c4_51, %c0_52] : memref<1x8x8x8xf32, #tpu.memory_space<vmem>>, vector<1x8x1x8xf32>
    %56 = vector.shape_cast %55 : vector<1x8x1x8xf32> to vector<8x8xf32>
    %57 = vector.shape_cast %54 : vector<8x8xf32> to vector<1x8x1x8xf32>
    tpu.vector_store %arg6[%c0_49, %c0_50, %c4_51, %c0_52], %57 {strides = array<i32>} : memref<1x8x8x8xf32, #tpu.memory_space<vmem>>, vector<1x8x1x8xf32>,
    %c0_53 = arith.constant 0 : index
    %c0_54 = arith.constant 0 : index
    %c10 = arith.constant 10 : index
    %c0_55 = arith.constant 0 : index
    %58 = vector.load %arg2[%c0_53, %c0_54, %c10, %c0_55] : memref<1x4x16x16xf32, #tpu.memory_space<vmem>>, vector<1x4x1x16xf32>
    %59 = vector.shape_cast %58 : vector<1x4x1x16xf32> to vector<4x16xf32>
    %cst_56 = arith.constant dense<0.000000e+00> : vector<4x8xf32>
    %60 = tpu.matmul %59, %2, %cst_56 {dimension_numbers = #tpu.dot_dimension_numbers<[1], [0], [0], [1], [0, 0, 1, 1], [], []>} : vector<4x16xf32>, vector<16x8xf32>, vector<4x8xf32> -> vector<4x8xf32>
    %cst_57 = arith.constant dense<0.000000e+00> : vector<8x8xf32>
    %61 = tpu.matmul %0, %60, %cst_57 {dimension_numbers = #tpu.dot_dimension_numbers<[1], [0], [0], [1], [0, 0, 1, 1], [], []>} : vector<8x4xf32>, vector<4x8xf32>, vector<8x8xf32> -> vector<8x8xf32>
    %62 = vector.broadcast %1 : vector<8x1xf32> to vector<8x8xf32>
    %63 = arith.addf %61, %62 : vector<8x8xf32>
    %cst_58 = arith.constant 0.000000e+00 : f32
    %64 = vector.broadcast %cst_58 : f32 to vector<8x8xf32>
    %65 = arith.maximumf %63, %64 : vector<8x8xf32>
    %c0_59 = arith.constant 0 : index
    %c0_60 = arith.constant 0 : index
    %c5 = arith.constant 5 : index
    %c0_61 = arith.constant 0 : index
    %66 = vector.load %arg6[%c0_59, %c0_60, %c5, %c0_61] : memref<1x8x8x8xf32, #tpu.memory_space<vmem>>, vector<1x8x1x8xf32>
    %67 = vector.shape_cast %66 : vector<1x8x1x8xf32> to vector<8x8xf32>
    %68 = vector.shape_cast %65 : vector<8x8xf32> to vector<1x8x1x8xf32>
    tpu.vector_store %arg6[%c0_59, %c0_60, %c5, %c0_61], %68 {strides = array<i32>} : memref<1x8x8x8xf32, #tpu.memory_space<vmem>>, vector<1x8x1x8xf32>,
    %c0_62 = arith.constant 0 : index
    %c0_63 = arith.constant 0 : index
    %c12 = arith.constant 12 : index
    %c0_64 = arith.constant 0 : index
    %69 = vector.load %arg2[%c0_62, %c0_63, %c12, %c0_64] : memref<1x4x16x16xf32, #tpu.memory_space<vmem>>, vector<1x4x1x16xf32>
    %70 = vector.shape_cast %69 : vector<1x4x1x16xf32> to vector<4x16xf32>
    %cst_65 = arith.constant dense<0.000000e+00> : vector<4x8xf32>
    %71 = tpu.matmul %70, %2, %cst_65 {dimension_numbers = #tpu.dot_dimension_numbers<[1], [0], [0], [1], [0, 0, 1, 1], [], []>} : vector<4x16xf32>, vector<16x8xf32>, vector<4x8xf32> -> vector<4x8xf32>
    %cst_66 = arith.constant dense<0.000000e+00> : vector<8x8xf32>
    %72 = tpu.matmul %0, %71, %cst_66 {dimension_numbers = #tpu.dot_dimension_numbers<[1], [0], [0], [1], [0, 0, 1, 1], [], []>} : vector<8x4xf32>, vector<4x8xf32>, vector<8x8xf32> -> vector<8x8xf32>
    %73 = vector.broadcast %1 : vector<8x1xf32> to vector<8x8xf32>
    %74 = arith.addf %72, %73 : vector<8x8xf32>
    %cst_67 = arith.constant 0.000000e+00 : f32
    %75 = vector.broadcast %cst_67 : f32 to vector<8x8xf32>
    %76 = arith.maximumf %74, %75 : vector<8x8xf32>
    %c0_68 = arith.constant 0 : index
    %c0_69 = arith.constant 0 : index
    %c6_70 = arith.constant 6 : index
    %c0_71 = arith.constant 0 : index
    %77 = vector.load %arg6[%c0_68, %c0_69, %c6_70, %c0_71] : memref<1x8x8x8xf32, #tpu.memory_space<vmem>>, vector<1x8x1x8xf32>
    %78 = vector.shape_cast %77 : vector<1x8x1x8xf32> to vector<8x8xf32>
    %79 = vector.shape_cast %76 : vector<8x8xf32> to vector<1x8x1x8xf32>
    tpu.vector_store %arg6[%c0_68, %c0_69, %c6_70, %c0_71], %79 {strides = array<i32>} : memref<1x8x8x8xf32, #tpu.memory_space<vmem>>, vector<1x8x1x8xf32>,
    %c0_72 = arith.constant 0 : index
    %c0_73 = arith.constant 0 : index
    %c14 = arith.constant 14 : index
    %c0_74 = arith.constant 0 : index
    %80 = vector.load %arg2[%c0_72, %c0_73, %c14, %c0_74] : memref<1x4x16x16xf32, #tpu.memory_space<vmem>>, vector<1x4x1x16xf32>
    %81 = vector.shape_cast %80 : vector<1x4x1x16xf32> to vector<4x16xf32>
    %cst_75 = arith.constant dense<0.000000e+00> : vector<4x8xf32>
    %82 = tpu.matmul %81, %2, %cst_75 {dimension_numbers = #tpu.dot_dimension_numbers<[1], [0], [0], [1], [0, 0, 1, 1], [], []>} : vector<4x16xf32>, vector<16x8xf32>, vector<4x8xf32> -> vector<4x8xf32>
    %cst_76 = arith.constant dense<0.000000e+00> : vector<8x8xf32>
    %83 = tpu.matmul %0, %82, %cst_76 {dimension_numbers = #tpu.dot_dimension_numbers<[1], [0], [0], [1], [0, 0, 1, 1], [], []>} : vector<8x4xf32>, vector<4x8xf32>, vector<8x8xf32> -> vector<8x8xf32>
    %84 = vector.broadcast %1 : vector<8x1xf32> to vector<8x8xf32>
    %85 = arith.addf %83, %84 : vector<8x8xf32>
    %cst_77 = arith.constant 0.000000e+00 : f32
    %86 = vector.broadcast %cst_77 : f32 to vector<8x8xf32>
    %87 = arith.maximumf %85, %86 : vector<8x8xf32>
    %c0_78 = arith.constant 0 : index
    %c0_79 = arith.constant 0 : index
    %c7 = arith.constant 7 : index
    %c0_80 = arith.constant 0 : index
    %88 = vector.load %arg6[%c0_78, %c0_79, %c7, %c0_80] : memref<1x8x8x8xf32, #tpu.memory_space<vmem>>, vector<1x8x1x8xf32>
    %89 = vector.shape_cast %88 : vector<1x8x1x8xf32> to vector<8x8xf32>
    %90 = vector.shape_cast %87 : vector<8x8xf32> to vector<1x8x1x8xf32>
    tpu.vector_store %arg6[%c0_78, %c0_79, %c7, %c0_80], %90 {strides = array<i32>} : memref<1x8x8x8xf32, #tpu.memory_space<vmem>>, vector<1x8x1x8xf32>,
    return
  }
  func.func @transform_0(%arg0: i32, %arg1: i32) -> (i32, i32, i32, i32) {
    %c0_i32 = arith.constant 0 : i32
    %c0_i32_0 = arith.constant 0 : i32
    %c0_i32_1 = arith.constant 0 : i32
    return %arg0, %c0_i32, %arg1, %c0_i32_0 : i32, i32, i32, i32
  }
  func.func @transform_1(%arg0: i32, %arg1: i32) -> (i32, i32) {
    %c0_i32 = arith.constant 0 : i32
    %c0_i32_0 = arith.constant 0 : i32
    %c0_i32_1 = arith.constant 0 : i32
    return %c0_i32, %c0_i32_0 : i32, i32
  }
  func.func @transform_2(%arg0: i32, %arg1: i32) -> (i32, i32) {
    %c0_i32 = arith.constant 0 : i32
    %c0_i32_0 = arith.constant 0 : i32
    %c0_i32_1 = arith.constant 0 : i32
    return %c0_i32, %c0_i32_0 : i32, i32
  }
  func.func @transform_3(%arg0: i32, %arg1: i32) -> (i32, i32) {
    %c0_i32 = arith.constant 0 : i32
    %c0_i32_0 = arith.constant 0 : i32
    %c0_i32_1 = arith.constant 0 : i32
    return %c0_i32, %c0_i32_0 : i32, i32
  }
  func.func @transform_4(%arg0: i32, %arg1: i32) -> (i32, i32, i32, i32) {
    %c0_i32 = arith.constant 0 : i32
    %c0_i32_0 = arith.constant 0 : i32
    %c0_i32_1 = arith.constant 0 : i32
    return %arg0, %c0_i32, %arg1, %c0_i32_0 : i32, i32, i32, i32
  }
}

</mosaic_0001>

<llo_original>
// kernel: tpu_custom_call.1
$region0: #{tpu_custom_call.1}
  #allocation0 [shape = 'u32[]', space=smem, size = 0x4, offset = 0x4, fixed_abs, tag = 'smem constant byte address 0x4 - core index']
  #allocation1 [shape = 'u32[144,128]{1,0:T(1,128)}', space=vmem, size = 0x12000, scoped, tag = 'internal scratch']
  %s0 = inlined_call_operand.hbm [shape: f32[2,4,16,16], index: 0, kind: input, shape index: {}]
  %s1 = inlined_call_operand.vmem [shape: f32[8,4], index: 1, kind: input, shape index: {}]
  %s2 = inlined_call_operand.vmem [shape: f32[8,1], index: 2, kind: input, shape index: {}]
  %s3 = inlined_call_operand.vmem [shape: f32[16,8], index: 3, kind: input, shape index: {}]
  %s4 = inlined_call_operand.hbm [shape: f32[2,8,8,8], index: 4, kind: output, shape index: {}]
  %s5 = sld [smem:[#allocation0]]
  $region53: #{tpu_custom_call.1} parent=0
    _
  %s7 = ssub.s32 1, %s5
  %s8 = scalar_select 0, %s7, %s5
  $region1: #{tpu_custom_call.1} parent=0
    #allocation2 [shape = 'u8[65536]{0}', space=vmem, size = 0x10000, scoped, tag = 'input window, operand 0']
    #allocation3 [shape = 's32[2]{0}', space=sflag, size = 0x8, scoped, tag = 'scoped memory for tpu_custom_call.1']
    #allocation4 [shape = 's32[2]{0}', space=sflag, size = 0x8, scoped, tag = 'scoped memory for tpu_custom_call.1']
    #allocation5 [shape = 'u8[65536]{0}', space=vmem, size = 0x10000, scoped, tag = 'output window, operand 0']
    %9 = vsyncpa [#allocation3], 0
    %s10 = scalar_lea.sflag [#allocation3], 1
    %11 = vsyncpa %s10, 0
    %12 = vsyncpa [#allocation4], 0
    %s13 = scalar_lea.sflag [#allocation4], 1
    %14 = vsyncpa %s13, 0
    loop: start=0, step=1, limit=4
    $region2: #{tpu_custom_call.1} parent=1 // loop_pre_header
      _
    $region3: #{tpu_custom_call.1} parent=1 // loop_header
      %s16 = sphi 0, %s20
      %p17 = scmp.ge.s32.totalorder %s16, 4
      %s23 = sphi 0, %s35
      %s24 = sphi 0, %s31
      %s25 = sphi 0, %s23
      %s26 = sphi 0, %s24
      %s27 = sphi 0, %s25
      %s28 = sphi 0, %s26
      %s40 = sphi 0, %s42
      %s43 = sphi 0, %s40
      %s44 = sphi 0, %s43
      %s60 = sphi 0, %s44
      %s64 = sphi 0, %s64
      %s66 = sphi 0, %s64
      %s67 = sphi 0, %s66
      %s81 = sphi 0, %s67
      %s85 = sphi 0, %s85
      %s87 = sphi 0, %s85
      %s88 = sphi 0, %s87
      %s102 = sphi 0, %s88
      %s106 = sphi 0, %s106
      %s108 = sphi 0, %s106
      %s109 = sphi 0, %s108
      %s123 = sphi 0, %s109
      %s131 = sphi 0, %s133
      %s134 = sphi 0, %s131
      %s135 = sphi 0, %s134
      %s151 = sphi 0, %s135
    $region4: #{tpu_custom_call.1} parent=1 // loop_header_branch
      %19 = sbr.rel (%p17) target = $region8
    $region5: #{tpu_custom_call.1} parent=1 // loop_body
      %s21 = ssub.s32 %s16, 1
      %s22 = ssub.s32 %s16, 2
      %s29 = sadd.s32 1, %s24
      %p30 = scmp.ge.s32.totalorder %s29, 1
      %s31 = scalar_select %p30, 0, %s29
      %s32 = sadd.s32 1, %s23
      %s33 = scalar_select %p30, %s32, %s23
      %p34 = scmp.ge.s32.totalorder %s33, 2
      %s35 = scalar_select %p34, 0, %s33
      %s36 = ssub.s32 %s23, %s35
      %s37 = ssub.s32 %s24, %s31
      %s38 = sor.u32 %s36, %s37
      %p39 = scmp.eq.s32.totalorder %s38, 0
      %s41 = sadd.s32 %s40, 1
      %s42 = scalar_select %p39, %s40, %s41
      %p45 = pneg %p39
      %p46 = scmp.eq.s32.totalorder %s16, 1
      %p47 = por %p45, %p46
      %p48 = scmp.ne.s32.totalorder %s40, %s43
      %p49 = scmp.eq.s32.totalorder %s16, 0
      %p50 = por %p48, %p49
      %p51 = scmp.ne.s32.totalorder %s40, %s43
      %p52 = scmp.eq.s32.totalorder %s21, 1
      %p53 = por %p51, %p52
      %p54 = scmp.ne.s32.totalorder %s43, %s44
      %p55 = scmp.eq.s32.totalorder %s21, 0
      %p56 = por %p54, %p55
      %p57 = scmp.ne.s32.totalorder %s43, %s44
      %p58 = scmp.eq.s32.totalorder %s22, 1
      %p59 = por %p57, %p58
      %p61 = scmp.ne.s32.totalorder %s44, %s60
      %p62 = scmp.eq.s32.totalorder %s22, 0
      %p63 = por %p61, %p62
      %s65 = sadd.s32 %s64, 1
      %p68 = scmp.eq.s32.totalorder %s16, 1
      %p69 = scmp.ne.s32.totalorder %s64, %s66
      %p70 = scmp.eq.s32.totalorder %s16, 0
      %p71 = por %p69, %p70
      %p72 = scmp.ne.s32.totalorder %s64, %s66
      %p73 = scmp.eq.s32.totalorder %s21, 1
      %p74 = por %p72, %p73
      %p75 = scmp.ne.s32.totalorder %s66, %s67
      %p76 = scmp.eq.s32.totalorder %s21, 0
      %p77 = por %p75, %p76
      %p78 = scmp.ne.s32.totalorder %s66, %s67
      %p79 = scmp.eq.s32.totalorder %s22, 1
      %p80 = por %p78, %p79
      %p82 = scmp.ne.s32.totalorder %s67, %s81
      %p83 = scmp.eq.s32.totalorder %s22, 0
      %p84 = por %p82, %p83
      %s86 = sadd.s32 %s85, 1
      %p89 = scmp.eq.s32.totalorder %s16, 1
      %p90 = scmp.ne.s32.totalorder %s85, %s87
      %p91 = scmp.eq.s32.totalorder %s16, 0
      %p92 = por %p90, %p91
      %p93 = scmp.ne.s32.totalorder %s85, %s87
      %p94 = scmp.eq.s32.totalorder %s21, 1
      %p95 = por %p93, %p94
      %p96 = scmp.ne.s32.totalorder %s87, %s88
      %p97 = scmp.eq.s32.totalorder %s21, 0
      %p98 = por %p96, %p97
      %p99 = scmp.ne.s32.totalorder %s87, %s88
      %p100 = scmp.eq.s32.totalorder %s22, 1
      %p101 = por %p99, %p100
      %p103 = scmp.ne.s32.totalorder %s88, %s102
      %p104 = scmp.eq.s32.totalorder %s22, 0
      %p105 = por %p103, %p104
      %s107 = sadd.s32 %s106, 1
      %p110 = scmp.eq.s32.totalorder %s16, 1
      %p111 = scmp.ne.s32.totalorder %s106, %s108
      %p112 = scmp.eq.s32.totalorder %s16, 0
      %p113 = por %p111, %p112
      %p114 = scmp.ne.s32.totalorder %s106, %s108
      %p115 = scmp.eq.s32.totalorder %s21, 1
      %p116 = por %p114, %p115
      %p117 = scmp.ne.s32.totalorder %s108, %s109
      %p118 = scmp.eq.s32.totalorder %s21, 0
      %p119 = por %p117, %p118
      %p120 = scmp.ne.s32.totalorder %s108, %s109
      %p121 = scmp.eq.s32.totalorder %s22, 1
      %p122 = por %p120, %p121
      %p124 = scmp.ne.s32.totalorder %s109, %s123
      %p125 = scmp.eq.s32.totalorder %s22, 0
      %p126 = por %p124, %p125
      %s127 = ssub.s32 %s23, %s35
      %s128 = ssub.s32 %s24, %s31
      %s129 = sor.u32 %s127, %s128
      %p130 = scmp.eq.s32.totalorder %s129, 0
      %s132 = sadd.s32 %s131, 1
      %s133 = scalar_select %p130, %s131, %s132
      %p136 = pneg %p130
      %p137 = scmp.eq.s32.totalorder %s16, 1
      %p138 = por %p136, %p137
      %p139 = scmp.ne.s32.totalorder %s131, %s134
      %p140 = scmp.eq.s32.totalorder %s16, 0
      %p141 = por %p139, %p140
      %p142 = scmp.ne.s32.totalorder %s131, %s134
      %p143 = scmp.eq.s32.totalorder %s21, 1
      %p144 = por %p142, %p143
      %p145 = scmp.ne.s32.totalorder %s134, %s135
      %p146 = scmp.eq.s32.totalorder %s21, 0
      %p147 = por %p145, %p146
      %p148 = scmp.ne.s32.totalorder %s134, %s135
      %p149 = scmp.eq.s32.totalorder %s22, 1
      %p150 = por %p148, %p149
      %p152 = scmp.ne.s32.totalorder %s135, %s151
      %p153 = scmp.eq.s32.totalorder %s22, 0
      %p154 = por %p152, %p153
      %p155 = scmp.le.s32.totalorder 1, %s16
      %p156 = scmp.lt.s32.totalorder %s16, 3
      %p157 = pnand %p155, %p156
      %p158 = pneg %p157
      // Predicated region
      $region9: #{tpu_custom_call.1} parent=5 // pred_check
        _
      $region10: #{tpu_custom_call.1} parent=5 // pred_check_branch
        %160 = sbr.rel (%p157) target = $region12
      $region11: #{tpu_custom_call.1} parent=5 // pred_region
        %s161 = ssub.s32 %s16, 1
        // Predicated region
        $region13: #{tpu_custom_call.1} parent=11 // pred_check
          %p162 = pneg %p77
        $region14: #{tpu_custom_call.1} parent=11 // pred_check_branch
          %164 = sbr.rel (%p162) target = $region16
        $region15: #{tpu_custom_call.1} parent=11 // pred_region
          _
        $region16: #{tpu_custom_call.1} parent=11 // pred_fallthru
          _
        // Predicated region
        $region17: #{tpu_custom_call.1} parent=11 // pred_check
          %p165 = pneg %p98
        $region18: #{tpu_custom_call.1} parent=11 // pred_check_branch
          %167 = sbr.rel (%p165) target = $region20
        $region19: #{tpu_custom_call.1} parent=11 // pred_region
          _
        $region20: #{tpu_custom_call.1} parent=11 // pred_fallthru
          _
        // Predicated region
        $region21: #{tpu_custom_call.1} parent=11 // pred_check
          %p168 = pneg %p119
        $region22: #{tpu_custom_call.1} parent=11 // pred_check_branch
          %170 = sbr.rel (%p168) target = $region24
        $region23: #{tpu_custom_call.1} parent=11 // pred_region
          _
        $region24: #{tpu_custom_call.1} parent=11 // pred_fallthru
          _
      $region12: #{tpu_custom_call.1} parent=5 // pred_fallthru
        _
      %p171 = scmp.lt.s32.totalorder %s16, 2
      // Predicated region
      $region25: #{tpu_custom_call.1} parent=5 // pred_check
        %p172 = pneg %p171
      $region26: #{tpu_custom_call.1} parent=5 // pred_check_branch
        %174 = sbr.rel (%p172) target = $region28
      $region27: #{tpu_custom_call.1} parent=5 // pred_region
        // Predicated region
        $region29: #{tpu_custom_call.1} parent=27 // pred_check
          %p175 = pneg %p50
        $region30: #{tpu_custom_call.1} parent=27 // pred_check_branch
          %177 = sbr.rel (%p175) target = $region32
        $region31: #{tpu_custom_call.1} parent=27 // pred_region
          %s178 = sand.u32 %s40, 1
          %s179 = scalar_lea.sflag [#allocation3], %s178
          %s180 = sand.u32 %s40, 1
          %s181 = smul.addr %s180, 64
          %s182 = scalar_lea.vmem [#allocation2], %s181
          %s183 = smul.u32 2, %s24
          %s185 = ssub.s32 1024, 1024
          %186 = vsyncadd %s179, %s185
          %s187 = smul.addr %s23, 8
          %s188 = sadd.s32 %s183, %s187
          %s189 = smul.addr %s188, 128
          %s190 = scalar_lea.hbm %s0, %s189
          %s191 = sshll.u32 %s182, 4
          %s192 = int_to_ptr.vmem [resolvable:$true] %s191
          %197 = dma.hbm_to_vmem [thread:$0]  %s190, 1024, %s192, %s179, 128, 128, 8
        $region32: #{tpu_custom_call.1} parent=27 // pred_fallthru
          _
      $region28: #{tpu_custom_call.1} parent=5 // pred_fallthru
        _
      %p198 = scmp.le.s32.totalorder 1, %s16
      %p199 = scmp.lt.s32.totalorder %s16, 3
      %p200 = pnand %p198, %p199
      %p201 = pneg %p200
      // Predicated region
      $region33: #{tpu_custom_call.1} parent=5 // pred_check
        _
      $region34: #{tpu_custom_call.1} parent=5 // pred_check_branch
        %203 = sbr.rel (%p200) target = $region36
      $region35: #{tpu_custom_call.1} parent=5 // pred_region
        %s204 = ssub.s32 %s16, 1
        %s205 = sand.u32 %s43, 1
        %s206 = scalar_lea.sflag [#allocation3], %s205
        %s207 = sand.u32 %s43, 1
        %s208 = smul.addr %s207, 64
        %s209 = scalar_lea.vmem [#allocation2], %s208
        // Predicated region
        $region37: #{tpu_custom_call.1} parent=35 // pred_check
          %p210 = pneg %p56
        $region38: #{tpu_custom_call.1} parent=35 // pred_check_branch
          %212 = sbr.rel (%p210) target = $region40
        $region39: #{tpu_custom_call.1} parent=35 // pred_region
          %213 = dma.done %s206, 1024
        $region40: #{tpu_custom_call.1} parent=35 // pred_fallthru
          _
        %s214 = sand.u32 %s43, 1
        %s215 = scalar_lea.sflag [#allocation3], %s214
        %s216 = sand.u32 %s43, 1
        %s217 = smul.addr %s216, 64
        %s218 = scalar_lea.vmem [#allocation2], %s217
        %p219 = pneg %p56
        %p220 = pneg %p53
        %p221 = pneg %p77
        %p222 = pneg %p74
        %p223 = pneg %p98
        %p224 = pneg %p95
        %p225 = pneg %p119
        %p226 = pneg %p116
        %p227 = pneg %p147
        %p228 = pneg %p144
        %s229 = sand.u32 %s134, 1
        %s230 = scalar_lea.sflag [#allocation4], %s229
        %s231 = sand.u32 %s134, 1
        %s232 = smul.addr %s231, 64
        %s233 = scalar_lea.vmem [#allocation5], %s232
        %s234 = smul.u32 2, %s26
        %v235 = vld [vmem:[%s1] sm:$0xff]
        %v236 = vld [vmem:[%s2] sm:$0xff]
        %v237 = vld [vmem:[%s3] sm:$0xff]
        %v238 = vld [vmem:[%s3 + $0x8] sm:$0xff]
        %v239 = vld [vmem:[%s209] sm:$0x1]
        %v240 = vld [vmem:[%s209 + $0x10] sm:$0x1]
        %v241 = vld [vmem:[%s209 + $0x20] sm:$0x1]
        %v242 = vld [vmem:[%s209 + $0x30] sm:$0x1]
        %v247 = vrot.slane %v240, 7
        %vm248 = vcmask 1041409
        %v249 = vsel %vm248, %v247, %v239
        %v250 = vrot.slane %v241, 6
        %vm251 = vcmask 1042434
        %v252 = vsel %vm251, %v250, %v249
        %v253 = vrot.slane %v242, 5
        %vm254 = vcmask 1043459
        %v255 = vsel %vm254, %v253, %v252
        %vm256 = vcmask 130048
        %v257 = vsel %vm256, %v255, 0
        %259 = vmatprep.subr.mxu0 0.0
        %260 = vmatpush1.msra.mxu0 %v237
        %261 = vmatprep.subr.mxu0 0.0
        %262 = vmatpush1.msra.mxu0 %v238
        %263 = vmatprep.subr.mxu0 0.0
        %264 = vmatpush1.msra.mxu0 0.0
        %265 = vmatprep.subr.mxu0 0.0
        %266 = vmatpush1.msra.mxu0 0.0
        %267 = vmatprep.subr.mxu0 0.0
        %268 = vmatpush1.msra.mxu0 0.0
        %269 = vmatprep.subr.mxu0 0.0
        %270 = vmatpush1.msra.mxu0 0.0
        %271 = vmatprep.subr.mxu0 0.0
        %272 = vmatpush1.msra.mxu0 0.0
        %273 = vmatprep.subr.mxu0 0.0
        %274 = vmatpush1.msra.mxu0 0.0
        %275 = vmatprep.subr.mxu0 0.0
        %276 = vmatpush1.msra.mxu0 0.0
        %277 = vmatprep.subr.mxu0 0.0
        %278 = vmatpush1.msra.mxu0 0.0
        %279 = vmatprep.subr.mxu0 0.0
        %280 = vmatpush1.msra.mxu0 0.0
        %281 = vmatprep.subr.mxu0 0.0
        %282 = vmatpush1.msra.mxu0 0.0
        %283 = vmatprep.subr.mxu0 0.0
        %284 = vmatpush1.msra.mxu0 0.0
        %285 = vmatprep.subr.mxu0 0.0
        %286 = vmatpush1.msra.mxu0 0.0
        %287 = vmatprep.subr.mxu0 0.0
        %288 = vmatpush1.msra.mxu0 0.0
        %289 = vmatprep.subr.mxu0 0.0
        %290 = vmatpush1.msra.mxu0 0.0
        %291 = vmatprep.subr.mxu0 0.0
        %292 = vmatpush1.msra.mxu0 0.0
        %293 = vmatprep.subr.mxu0 0.0
        %294 = vmatpush1.msra.mxu0 0.0
        %295 = vmatprep.subr.mxu0 0.0
        %296 = vmatpush1.msra.mxu0 0.0
        %297 = vmatprep.subr.mxu0 0.0
        %298 = vmatpush1.msra.mxu0 0.0
        %299 = vmatprep.subr.mxu0 0.0
        %300 = vmatpush1.msra.mxu0 0.0
        %301 = vmatprep.subr.mxu0 0.0
        %302 = vmatpush1.msra.mxu0 0.0
        %303 = vmatprep.subr.mxu0 0.0
        %304 = vmatpush1.msra.mxu0 0.0
        %305 = vmatprep.subr.mxu0 0.0
        %306 = vmatpush1.msra.mxu0 0.0
        %307 = vmatprep.subr.mxu0 0.0
        %308 = vmatpush1.msra.mxu0 0.0
        %309 = vmatprep.subr.mxu0 0.0
        %310 = vmatpush1.msra.mxu0 0.0
        %311 = vmatprep.subr.mxu0 0.0
        %312 = vmatpush1.msra.mxu0 0.0
        %313 = vmatprep.subr.mxu0 0.0
        %314 = vmatpush1.msra.mxu0 0.0
        %315 = vmatprep.subr.mxu0 0.0
        %316 = vmatpush1.msra.mxu0 0.0
        %317 = vmatprep.subr.mxu0 0.0
        %318 = vmatpush1.msra.mxu0 0.0
        %319 = vmatprep.subr.mxu0 0.0
        %320 = vmatpush1.msra.mxu0 0.0
        %321 = vmatprep.subr.mxu0 0.0
        %322 = vmatpush1.msra.mxu0 0.0
        %323 = vmatprep.mubr.f32.mxu0 0.0
        %324 = vmatmul.mubr.f32.gmra.mrb[0].mxu0 %v257
        %v325 = vpop.f32.mrb[0].mxu0
        %v326 = vadd.f32 0.0, %v325
        %v327 = vpop.f32.mrb[0].mxu0
        %328 = vdwg.mxu0
        %330 = vset.pattern.permute.xlu0 0
        %331 = vperm.xlu0 %330, %v236
        %v332 = vpop.permute.xlu0 %331
        %vm334 = vcmask 31744
        %v336 = vsel %vm334, %v235, 0
        %vm338 = vcmask 1043456
        %v340 = vsel %vm338, %v326, 0
        %342 = vmatprep.subr.mxu0 0.0
        %343 = vmatpush1.msra.mxu0 %v340
        %344 = vmatprep.subr.mxu0 0.0
        %345 = vmatpush1.msra.mxu0 0.0
        %346 = vmatprep.subr.mxu0 0.0
        %347 = vmatpush1.msra.mxu0 0.0
        %348 = vmatprep.subr.mxu0 0.0
        %349 = vmatpush1.msra.mxu0 0.0
        %350 = vmatprep.subr.mxu0 0.0
        %351 = vmatpush1.msra.mxu0 0.0
        %352 = vmatprep.subr.mxu0 0.0
        %353 = vmatpush1.msra.mxu0 0.0
        %354 = vmatprep.subr.mxu0 0.0
        %355 = vmatpush1.msra.mxu0 0.0
        %356 = vmatprep.subr.mxu0 0.0
        %357 = vmatpush1.msra.mxu0 0.0
        %358 = vmatprep.subr.mxu0 0.0
        %359 = vmatpush1.msra.mxu0 0.0
        %360 = vmatprep.subr.mxu0 0.0
        %361 = vmatpush1.msra.mxu0 0.0
        %362 = vmatprep.subr.mxu0 0.0
        %363 = vmatpush1.msra.mxu0 0.0
        %364 = vmatprep.subr.mxu0 0.0
        %365 = vmatpush1.msra.mxu0 0.0
        %366 = vmatprep.subr.mxu0 0.0
        %367 = vmatpush1.msra.mxu0 0.0
        %368 = vmatprep.subr.mxu0 0.0
        %369 = vmatpush1.msra.mxu0 0.0
        %370 = vmatprep.subr.mxu0 0.0
        %371 = vmatpush1.msra.mxu0 0.0
        %372 = vmatprep.subr.mxu0 0.0
        %373 = vmatpush1.msra.mxu0 0.0
        %374 = vmatprep.subr.mxu0 0.0
        %375 = vmatpush1.msra.mxu0 0.0
        %376 = vmatprep.subr.mxu0 0.0
        %377 = vmatpush1.msra.mxu0 0.0
        %378 = vmatprep.subr.mxu0 0.0
        %379 = vmatpush1.msra.mxu0 0.0
        %380 = vmatprep.subr.mxu0 0.0
        %381 = vmatpush1.msra.mxu0 0.0
        %382 = vmatprep.subr.mxu0 0.0
        %383 = vmatpush1.msra.mxu0 0.0
        %384 = vmatprep.subr.mxu0 0.0
        %385 = vmatpush1.msra.mxu0 0.0
        %386 = vmatprep.subr.mxu0 0.0
        %387 = vmatpush1.msra.mxu0 0.0
        %388 = vmatprep.subr.mxu0 0.0
        %389 = vmatpush1.msra.mxu0 0.0
        %390 = vmatprep.subr.mxu0 0.0
        %391 = vmatpush1.msra.mxu0 0.0
        %392 = vmatprep.subr.mxu0 0.0
        %393 = vmatpush1.msra.mxu0 0.0
        %394 = vmatprep.subr.mxu0 0.0
        %395 = vmatpush1.msra.mxu0 0.0
        %396 = vmatprep.subr.mxu0 0.0
        %397 = vmatpush1.msra.mxu0 0.0
        %398 = vmatprep.subr.mxu0 0.0
        %399 = vmatpush1.msra.mxu0 0.0
        %400 = vmatprep.subr.mxu0 0.0
        %401 = vmatpush1.msra.mxu0 0.0
        %402 = vmatprep.subr.mxu0 0.0
        %403 = vmatpush1.msra.mxu0 0.0
        %404 = vmatprep.subr.mxu0 0.0
        %405 = vmatpush1.msra.mxu0 0.0
        %406 = vmatprep.mubr.f32.mxu0 0.0
        %407 = vmatmul.mubr.f32.gmra.mrb[0].mxu0 %v336
        %v408 = vpop.f32.mrb[0].mxu0
        %v409 = vadd.f32 %v332, %v408
        %v410 = vpop.f32.mrb[0].mxu0
        %411 = vdwg.mxu0
        %v412 = vmax.f32 %v409, 0.0
        %v414 = vcombine.high %v412, %v412
        %v416 = vunpack.c.l.s4 1966171168
        %v417 = vunpack.c.0.s8 %v416
        %v418 = vlaneseq
        %v419 = vshrl.u32 %v418, 7
        %v420 = vsub.s32 %v417, %v419
        %v421 = vrot.slane %v412, %v420
        %v423 = vunpack.c.l.s4 1966171168
        %v424 = vunpack.c.0.s8 %v423
        %v425 = vlaneseq
        %v426 = vshrl.u32 %v425, 7
        %v427 = vsub.s32 %v424, %v426
        %v428 = vrot.slane %v414, %v427
        %v429 = vcombine.high %v421, %v421
        %v430 = vcombine.high %v428, %v428
        %v432 = vunpack.c.l.s4 1966171168
        %v433 = vunpack.c.0.s8 %v432
        %v434 = vlaneseq
        %v435 = vshrl.u32 %v434, 7
        %v436 = vsub.s32 %v433, %v435
        %v437 = vrot.slane %v421, %v436
        %v439 = vunpack.c.l.s4 1966171168
        %v440 = vunpack.c.0.s8 %v439
        %v441 = vlaneseq
        %v442 = vshrl.u32 %v441, 7
        %v443 = vsub.s32 %v440, %v442
        %v444 = vrot.slane %v428, %v443
        %v446 = vunpack.c.l.s4 1966171168
        %v447 = vunpack.c.0.s8 %v446
        %v448 = vlaneseq
        %v449 = vshrl.u32 %v448, 7
        %v450 = vsub.s32 %v447, %v449
        %v451 = vrot.slane %v429, %v450
        %v453 = vunpack.c.l.s4 1966171168
        %v454 = vunpack.c.0.s8 %v453
        %v455 = vlaneseq
        %v456 = vshrl.u32 %v455, 7
        %v457 = vsub.s32 %v454, %v456
        %v458 = vrot.slane %v430, %v457
        %v459 = vcombine.high %v437, %v437
        %v460 = vcombine.high %v444, %v444
        %v461 = vcombine.high %v451, %v451
        %v462 = vcombine.high %v458, %v458
        %vm471 = vcmask 57344
        %472 = vst.msk [vmem:[%s233] sm:$0x1] %vm471, %v437
        %473 = vst.msk [vmem:[%s233 + $0x8] sm:$0x1] %vm471, %v451
        %474 = vst.msk [vmem:[%s233 + $0x10] sm:$0x1] %vm471, %v459
        %475 = vst.msk [vmem:[%s233 + $0x18] sm:$0x1] %vm471, %v461
        %476 = vst.msk [vmem:[%s233 + $0x20] sm:$0x1] %vm471, %v444
        %477 = vst.msk [vmem:[%s233 + $0x28] sm:$0x1] %vm471, %v458
        %478 = vst.msk [vmem:[%s233 + $0x30] sm:$0x1] %vm471, %v460
        %479 = vst.msk [vmem:[%s233 + $0x38] sm:$0x1] %vm471, %v462
        %v480 = vld [vmem:[%s209 + $0x2] sm:$0x1]
        %v481 = vld [vmem:[%s209 + $0x12] sm:$0x1]
        %v482 = vld [vmem:[%s209 + $0x22] sm:$0x1]
        %v483 = vld [vmem:[%s209 + $0x32] sm:$0x1]
        %v488 = vrot.slane %v481, 7
        %v489 = vsel %vm248, %v488, %v480
        %v490 = vrot.slane %v482, 6
        %v491 = vsel %vm251, %v490, %v489
        %v492 = vrot.slane %v483, 5
        %v493 = vsel %vm254, %v492, %v491
        %v494 = vsel %vm256, %v493, 0
        %496 = vmatprep.subr.mxu0 0.0
        %497 = vmatpush1.msra.mxu0 %v237
        %498 = vmatprep.subr.mxu0 0.0
        %499 = vmatpush1.msra.mxu0 %v238
        %500 = vmatprep.subr.mxu0 0.0
        %501 = vmatpush1.msra.mxu0 0.0
        %502 = vmatprep.subr.mxu0 0.0
        %503 = vmatpush1.msra.mxu0 0.0
        %504 = vmatprep.subr.mxu0 0.0
        %505 = vmatpush1.msra.mxu0 0.0
        %506 = vmatprep.subr.mxu0 0.0
        %507 = vmatpush1.msra.mxu0 0.0
        %508 = vmatprep.subr.mxu0 0.0
        %509 = vmatpush1.msra.mxu0 0.0
        %510 = vmatprep.subr.mxu0 0.0
        %511 = vmatpush1.msra.mxu0 0.0
        %512 = vmatprep.subr.mxu0 0.0
        %513 = vmatpush1.msra.mxu0 0.0
        %514 = vmatprep.subr.mxu0 0.0
        %515 = vmatpush1.msra.mxu0 0.0
        %516 = vmatprep.subr.mxu0 0.0
        %517 = vmatpush1.msra.mxu0 0.0
        %518 = vmatprep.subr.mxu0 0.0
        %519 = vmatpush1.msra.mxu0 0.0
        %520 = vmatprep.subr.mxu0 0.0
        %521 = vmatpush1.msra.mxu0 0.0
        %522 = vmatprep.subr.mxu0 0.0
        %523 = vmatpush1.msra.mxu0 0.0
        %524 = vmatprep.subr.mxu0 0.0
        %525 = vmatpush1.msra.mxu0 0.0
        %526 = vmatprep.subr.mxu0 0.0
        %527 = vmatpush1.msra.mxu0 0.0
        %528 = vmatprep.subr.mxu0 0.0
        %529 = vmatpush1.msra.mxu0 0.0
        %530 = vmatprep.subr.mxu0 0.0
        %531 = vmatpush1.msra.mxu0 0.0
        %532 = vmatprep.subr.mxu0 0.0
        %533 = vmatpush1.msra.mxu0 0.0
        %534 = vmatprep.subr.mxu0 0.0
        %535 = vmatpush1.msra.mxu0 0.0
        %536 = vmatprep.subr.mxu0 0.0
        %537 = vmatpush1.msra.mxu0 0.0
        %538 = vmatprep.subr.mxu0 0.0
        %539 = vmatpush1.msra.mxu0 0.0
        %540 = vmatprep.subr.mxu0 0.0
        %541 = vmatpush1.msra.mxu0 0.0
        %542 = vmatprep.subr.mxu0 0.0
        %543 = vmatpush1.msra.mxu0 0.0
        %544 = vmatprep.subr.mxu0 0.0
        %545 = vmatpush1.msra.mxu0 0.0
        %546 = vmatprep.subr.mxu0 0.0
        %547 = vmatpush1.msra.mxu0 0.0
        %548 = vmatprep.subr.mxu0 0.0
        %549 = vmatpush1.msra.mxu0 0.0
        %550 = vmatprep.subr.mxu0 0.0
        %551 = vmatpush1.msra.mxu0 0.0
        %552 = vmatprep.subr.mxu0 0.0
        %553 = vmatpush1.msra.mxu0 0.0
        %554 = vmatprep.subr.mxu0 0.0
        %555 = vmatpush1.msra.mxu0 0.0
        %556 = vmatprep.subr.mxu0 0.0
        %557 = vmatpush1.msra.mxu0 0.0
        %558 = vmatprep.subr.mxu0 0.0
        %559 = vmatpush1.msra.mxu0 0.0
        %560 = vmatprep.mubr.f32.mxu0 0.0
        %561 = vmatmul.mubr.f32.gmra.mrb[0].mxu0 %v494
        %v562 = vpop.f32.mrb[0].mxu0
        %v563 = vadd.f32 0.0, %v562
        %v564 = vpop.f32.mrb[0].mxu0
        %565 = vdwg.mxu0
        %v567 = vsel %vm338, %v563, 0
        %569 = vmatprep.subr.mxu0 0.0
        %570 = vmatpush1.msra.mxu0 %v567
        %571 = vmatprep.subr.mxu0 0.0
        %572 = vmatpush1.msra.mxu0 0.0
        %573 = vmatprep.subr.mxu0 0.0
        %574 = vmatpush1.msra.mxu0 0.0
        %575 = vmatprep.subr.mxu0 0.0
        %576 = vmatpush1.msra.mxu0 0.0
        %577 = vmatprep.subr.mxu0 0.0
        %578 = vmatpush1.msra.mxu0 0.0
        %579 = vmatprep.subr.mxu0 0.0
        %580 = vmatpush1.msra.mxu0 0.0
        %581 = vmatprep.subr.mxu0 0.0
        %582 = vmatpush1.msra.mxu0 0.0
        %583 = vmatprep.subr.mxu0 0.0
        %584 = vmatpush1.msra.mxu0 0.0
        %585 = vmatprep.subr.mxu0 0.0
        %586 = vmatpush1.msra.mxu0 0.0
        %587 = vmatprep.subr.mxu0 0.0
        %588 = vmatpush1.msra.mxu0 0.0
        %589 = vmatprep.subr.mxu0 0.0
        %590 = vmatpush1.msra.mxu0 0.0
        %591 = vmatprep.subr.mxu0 0.0
        %592 = vmatpush1.msra.mxu0 0.0
        %593 = vmatprep.subr.mxu0 0.0
        %594 = vmatpush1.msra.mxu0 0.0
        %595 = vmatprep.subr.mxu0 0.0
        %596 = vmatpush1.msra.mxu0 0.0
        %597 = vmatprep.subr.mxu0 0.0
        %598 = vmatpush1.msra.mxu0 0.0
        %599 = vmatprep.subr.mxu0 0.0
        %600 = vmatpush1.msra.mxu0 0.0
        %601 = vmatprep.subr.mxu0 0.0
        %602 = vmatpush1.msra.mxu0 0.0
        %603 = vmatprep.subr.mxu0 0.0
        %604 = vmatpush1.msra.mxu0 0.0
        %605 = vmatprep.subr.mxu0 0.0
        %606 = vmatpush1.msra.mxu0 0.0
        %607 = vmatprep.subr.mxu0 0.0
        %608 = vmatpush1.msra.mxu0 0.0
        %609 = vmatprep.subr.mxu0 0.0
        %610 = vmatpush1.msra.mxu0 0.0
        %611 = vmatprep.subr.mxu0 0.0
        %612 = vmatpush1.msra.mxu0 0.0
        %613 = vmatprep.subr.mxu0 0.0
        %614 = vmatpush1.msra.mxu0 0.0
        %615 = vmatprep.subr.mxu0 0.0
        %616 = vmatpush1.msra.mxu0 0.0
        %617 = vmatprep.subr.mxu0 0.0
        %618 = vmatpush1.msra.mxu0 0.0
        %619 = vmatprep.subr.mxu0 0.0
        %620 = vmatpush1.msra.mxu0 0.0
        %621 = vmatprep.subr.mxu0 0.0
        %622 = vmatpush1.msra.mxu0 0.0
        %623 = vmatprep.subr.mxu0 0.0
        %624 = vmatpush1.msra.mxu0 0.0
        %625 = vmatprep.subr.mxu0 0.0
        %626 = vmatpush1.msra.mxu0 0.0
        %627 = vmatprep.subr.mxu0 0.0
        %628 = vmatpush1.msra.mxu0 0.0
        %629 = vmatprep.subr.mxu0 0.0
        %630 = vmatpush1.msra.mxu0 0.0
        %631 = vmatprep.subr.mxu0 0.0
        %632 = vmatpush1.msra.mxu0 0.0
        %633 = vmatprep.mubr.f32.mxu0 0.0
        %634 = vmatmul.mubr.f32.gmra.mrb[0].mxu0 %v336
        %v635 = vpop.f32.mrb[0].mxu0
        %v636 = vadd.f32 %v332, %v635
        %v637 = vpop.f32.mrb[0].mxu0
        %638 = vdwg.mxu0
        %v639 = vmax.f32 %v636, 0.0
        %v641 = vcombine.high %v639, %v639
        %v643 = vunpack.c.l.s4 1966171168
        %v644 = vunpack.c.0.s8 %v643
        %v645 = vlaneseq
        %v646 = vshrl.u32 %v645, 7
        %v647 = vsub.s32 %v644, %v646
        %v648 = vrot.slane %v639, %v647
        %v650 = vunpack.c.l.s4 1966171168
        %v651 = vunpack.c.0.s8 %v650
        %v652 = vlaneseq
        %v653 = vshrl.u32 %v652, 7
        %v654 = vsub.s32 %v651, %v653
        %v655 = vrot.slane %v641, %v654
        %v656 = vcombine.high %v648, %v648
        %v657 = vcombine.high %v655, %v655
        %v659 = vunpack.c.l.s4 1966171168
        %v660 = vunpack.c.0.s8 %v659
        %v661 = vlaneseq
        %v662 = vshrl.u32 %v661, 7
        %v663 = vsub.s32 %v660, %v662
        %v664 = vrot.slane %v648, %v663
        %v666 = vunpack.c.l.s4 1966171168
        %v667 = vunpack.c.0.s8 %v666
        %v668 = vlaneseq
        %v669 = vshrl.u32 %v668, 7
        %v670 = vsub.s32 %v667, %v669
        %v671 = vrot.slane %v655, %v670
        %v673 = vunpack.c.l.s4 1966171168
        %v674 = vunpack.c.0.s8 %v673
        %v675 = vlaneseq
        %v676 = vshrl.u32 %v675, 7
        %v677 = vsub.s32 %v674, %v676
        %v678 = vrot.slane %v656, %v677
        %v680 = vunpack.c.l.s4 1966171168
        %v681 = vunpack.c.0.s8 %v680
        %v682 = vlaneseq
        %v683 = vshrl.u32 %v682, 7
        %v684 = vsub.s32 %v681, %v683
        %v685 = vrot.slane %v657, %v684
        %v686 = vcombine.high %v664, %v664
        %v687 = vcombine.high %v671, %v671
        %v688 = vcombine.high %v678, %v678
        %v689 = vcombine.high %v685, %v685
        %698 = vst.msk [vmem:[%s233 + $0x1] sm:$0x1] %vm471, %v664
        %699 = vst.msk [vmem:[%s233 + $0x9] sm:$0x1] %vm471, %v678
        %700 = vst.msk [vmem:[%s233 + $0x11] sm:$0x1] %vm471, %v686
        %701 = vst.msk [vmem:[%s233 + $0x19] sm:$0x1] %vm471, %v688
        %702 = vst.msk [vmem:[%s233 + $0x21] sm:$0x1] %vm471, %v671
        %703 = vst.msk [vmem:[%s233 + $0x29] sm:$0x1] %vm471, %v685
        %704 = vst.msk [vmem:[%s233 + $0x31] sm:$0x1] %vm471, %v687
        %705 = vst.msk [vmem:[%s233 + $0x39] sm:$0x1] %vm471, %v689
        %v706 = vld [vmem:[%s209 + $0x4] sm:$0x1]
        %v707 = vld [vmem:[%s209 + $0x14] sm:$0x1]
        %v708 = vld [vmem:[%s209 + $0x24] sm:$0x1]
        %v709 = vld [vmem:[%s209 + $0x34] sm:$0x1]
        %v714 = vrot.slane %v707, 7
        %v715 = vsel %vm248, %v714, %v706
        %v716 = vrot.slane %v708, 6
        %v717 = vsel %vm251, %v716, %v715
        %v718 = vrot.slane %v709, 5
        %v719 = vsel %vm254, %v718, %v717
        %v720 = vsel %vm256, %v719, 0
        %722 = vmatprep.subr.mxu0 0.0
        %723 = vmatpush1.msra.mxu0 %v237
        %724 = vmatprep.subr.mxu0 0.0
        %725 = vmatpush1.msra.mxu0 %v238
        %726 = vmatprep.subr.mxu0 0.0
        %727 = vmatpush1.msra.mxu0 0.0
        %728 = vmatprep.subr.mxu0 0.0
        %729 = vmatpush1.msra.mxu0 0.0
        %730 = vmatprep.subr.mxu0 0.0
        %731 = vmatpush1.msra.mxu0 0.0
        %732 = vmatprep.subr.mxu0 0.0
        %733 = vmatpush1.msra.mxu0 0.0
        %734 = vmatprep.subr.mxu0 0.0
        %735 = vmatpush1.msra.mxu0 0.0
        %736 = vmatprep.subr.mxu0 0.0
        %737 = vmatpush1.msra.mxu0 0.0
        %738 = vmatprep.subr.mxu0 0.0
        %739 = vmatpush1.msra.mxu0 0.0
        %740 = vmatprep.subr.mxu0 0.0
        %741 = vmatpush1.msra.mxu0 0.0
        %742 = vmatprep.subr.mxu0 0.0
        %743 = vmatpush1.msra.mxu0 0.0
        %744 = vmatprep.subr.mxu0 0.0
        %745 = vmatpush1.msra.mxu0 0.0
        %746 = vmatprep.subr.mxu0 0.0
        %747 = vmatpush1.msra.mxu0 0.0
        %748 = vmatprep.subr.mxu0 0.0
        %749 = vmatpush1.msra.mxu0 0.0
        %750 = vmatprep.subr.mxu0 0.0
        %751 = vmatpush1.msra.mxu0 0.0
        %752 = vmatprep.subr.mxu0 0.0
        %753 = vmatpush1.msra.mxu0 0.0
        %754 = vmatprep.subr.mxu0 0.0
        %755 = vmatpush1.msra.mxu0 0.0
        %756 = vmatprep.subr.mxu0 0.0
        %757 = vmatpush1.msra.mxu0 0.0
        %758 = vmatprep.subr.mxu0 0.0
        %759 = vmatpush1.msra.mxu0 0.0
        %760 = vmatprep.subr.mxu0 0.0
        %761 = vmatpush1.msra.mxu0 0.0
        %762 = vmatprep.subr.mxu0 0.0
        %763 = vmatpush1.msra.mxu0 0.0
        %764 = vmatprep.subr.mxu0 0.0
        %765 = vmatpush1.msra.mxu0 0.0
        %766 = vmatprep.subr.mxu0 0.0
        %767 = vmatpush1.msra.mxu0 0.0
        %768 = vmatprep.subr.mxu0 0.0
        %769 = vmatpush1.msra.mxu0 0.0
        %770 = vmatprep.subr.mxu0 0.0
        %771 = vmatpush1.msra.mxu0 0.0
        %772 = vmatprep.subr.mxu0 0.0
        %773 = vmatpush1.msra.mxu0 0.0
        %774 = vmatprep.subr.mxu0 0.0
        %775 = vmatpush1.msra.mxu0 0.0
        %776 = vmatprep.subr.mxu0 0.0
        %777 = vmatpush1.msra.mxu0 0.0
        %778 = vmatprep.subr.mxu0 0.0
        %779 = vmatpush1.msra.mxu0 0.0
        %780 = vmatprep.subr.mxu0 0.0
        %781 = vmatpush1.msra.mxu0 0.0
        %782 = vmatprep.subr.mxu0 0.0
        %783 = vmatpush1.msra.mxu0 0.0
        %784 = vmatprep.subr.mxu0 0.0
        %785 = vmatpush1.msra.mxu0 0.0
        %786 = vmatprep.mubr.f32.mxu0 0.0
        %787 = vmatmul.mubr.f32.gmra.mrb[0].mxu0 %v720
        %v788 = vpop.f32.mrb[0].mxu0
        %v789 = vadd.f32 0.0, %v788
        %v790 = vpop.f32.mrb[0].mxu0
        %791 = vdwg.mxu0
        %v793 = vsel %vm338, %v789, 0
        %795 = vmatprep.subr.mxu0 0.0
        %796 = vmatpush1.msra.mxu0 %v793
        %797 = vmatprep.subr.mxu0 0.0
        %798 = vmatpush1.msra.mxu0 0.0
        %799 = vmatprep.subr.mxu0 0.0
        %800 = vmatpush1.msra.mxu0 0.0
        %801 = vmatprep.subr.mxu0 0.0
        %802 = vmatpush1.msra.mxu0 0.0
        %803 = vmatprep.subr.mxu0 0.0
        %804 = vmatpush1.msra.mxu0 0.0
        %805 = vmatprep.subr.mxu0 0.0
        %806 = vmatpush1.msra.mxu0 0.0
        %807 = vmatprep.subr.mxu0 0.0
        %808 = vmatpush1.msra.mxu0 0.0
        %809 = vmatprep.subr.mxu0 0.0
        %810 = vmatpush1.msra.mxu0 0.0
        %811 = vmatprep.subr.mxu0 0.0
        %812 = vmatpush1.msra.mxu0 0.0
        %813 = vmatprep.subr.mxu0 0.0
        %814 = vmatpush1.msra.mxu0 0.0
        %815 = vmatprep.subr.mxu0 0.0
        %816 = vmatpush1.msra.mxu0 0.0
        %817 = vmatprep.subr.mxu0 0.0
        %818 = vmatpush1.msra.mxu0 0.0
        %819 = vmatprep.subr.mxu0 0.0
        %820 = vmatpush1.msra.mxu0 0.0
        %821 = vmatprep.subr.mxu0 0.0
        %822 = vmatpush1.msra.mxu0 0.0
        %823 = vmatprep.subr.mxu0 0.0
        %824 = vmatpush1.msra.mxu0 0.0
        %825 = vmatprep.subr.mxu0 0.0
        %826 = vmatpush1.msra.mxu0 0.0
        %827 = vmatprep.subr.mxu0 0.0
        %828 = vmatpush1.msra.mxu0 0.0
        %829 = vmatprep.subr.mxu0 0.0
        %830 = vmatpush1.msra.mxu0 0.0
        %831 = vmatprep.subr.mxu0 0.0
        %832 = vmatpush1.msra.mxu0 0.0
        %833 = vmatprep.subr.mxu0 0.0
        %834 = vmatpush1.msra.mxu0 0.0
        %835 = vmatprep.subr.mxu0 0.0
        %836 = vmatpush1.msra.mxu0 0.0
        %837 = vmatprep.subr.mxu0 0.0
        %838 = vmatpush1.msra.mxu0 0.0
        %839 = vmatprep.subr.mxu0 0.0
        %840 = vmatpush1.msra.mxu0 0.0
        %841 = vmatprep.subr.mxu0 0.0
        %842 = vmatpush1.msra.mxu0 0.0
        %843 = vmatprep.subr.mxu0 0.0
        %844 = vmatpush1.msra.mxu0 0.0
        %845 = vmatprep.subr.mxu0 0.0
        %846 = vmatpush1.msra.mxu0 0.0
        %847 = vmatprep.subr.mxu0 0.0
        %848 = vmatpush1.msra.mxu0 0.0
        %849 = vmatprep.subr.mxu0 0.0
        %850 = vmatpush1.msra.mxu0 0.0
        %851 = vmatprep.subr.mxu0 0.0
        %852 = vmatpush1.msra.mxu0 0.0
        %853 = vmatprep.subr.mxu0 0.0
        %854 = vmatpush1.msra.mxu0 0.0
        %855 = vmatprep.subr.mxu0 0.0
        %856 = vmatpush1.msra.mxu0 0.0
        %857 = vmatprep.subr.mxu0 0.0
        %858 = vmatpush1.msra.mxu0 0.0
        %859 = vmatprep.mubr.f32.mxu0 0.0
        %860 = vmatmul.mubr.f32.gmra.mrb[0].mxu0 %v336
        %v861 = vpop.f32.mrb[0].mxu0
        %v862 = vadd.f32 %v332, %v861
        %v863 = vpop.f32.mrb[0].mxu0
        %864 = vdwg.mxu0
        %v865 = vmax.f32 %v862, 0.0
        %v867 = vcombine.high %v865, %v865
        %v869 = vunpack.c.l.s4 1966171168
        %v870 = vunpack.c.0.s8 %v869
        %v871 = vlaneseq
        %v872 = vshrl.u32 %v871, 7
        %v873 = vsub.s32 %v870, %v872
        %v874 = vrot.slane %v865, %v873
        %v876 = vunpack.c.l.s4 1966171168
        %v877 = vunpack.c.0.s8 %v876
        %v878 = vlaneseq
        %v879 = vshrl.u32 %v878, 7
        %v880 = vsub.s32 %v877, %v879
        %v881 = vrot.slane %v867, %v880
        %v882 = vcombine.high %v874, %v874
        %v883 = vcombine.high %v881, %v881
        %v885 = vunpack.c.l.s4 1966171168
        %v886 = vunpack.c.0.s8 %v885
        %v887 = vlaneseq
        %v888 = vshrl.u32 %v887, 7
        %v889 = vsub.s32 %v886, %v888
        %v890 = vrot.slane %v874, %v889
        %v892 = vunpack.c.l.s4 1966171168
        %v893 = vunpack.c.0.s8 %v892
        %v894 = vlaneseq
        %v895 = vshrl.u32 %v894, 7
        %v896 = vsub.s32 %v893, %v895
        %v897 = vrot.slane %v881, %v896
        %v899 = vunpack.c.l.s4 1966171168
        %v900 = vunpack.c.0.s8 %v899
        %v901 = vlaneseq
        %v902 = vshrl.u32 %v901, 7
        %v903 = vsub.s32 %v900, %v902
        %v904 = vrot.slane %v882, %v903
        %v906 = vunpack.c.l.s4 1966171168
        %v907 = vunpack.c.0.s8 %v906
        %v908 = vlaneseq
        %v909 = vshrl.u32 %v908, 7
        %v910 = vsub.s32 %v907, %v909
        %v911 = vrot.slane %v883, %v910
        %v912 = vcombine.high %v890, %v890
        %v913 = vcombine.high %v897, %v897
        %v914 = vcombine.high %v904, %v904
        %v915 = vcombine.high %v911, %v911
        %924 = vst.msk [vmem:[%s233 + $0x2] sm:$0x1] %vm471, %v890
        %925 = vst.msk [vmem:[%s233 + $0xa] sm:$0x1] %vm471, %v904
        %926 = vst.msk [vmem:[%s233 + $0x12] sm:$0x1] %vm471, %v912
        %927 = vst.msk [vmem:[%s233 + $0x1a] sm:$0x1] %vm471, %v914
        %928 = vst.msk [vmem:[%s233 + $0x22] sm:$0x1] %vm471, %v897
        %929 = vst.msk [vmem:[%s233 + $0x2a] sm:$0x1] %vm471, %v911
        %930 = vst.msk [vmem:[%s233 + $0x32] sm:$0x1] %vm471, %v913
        %931 = vst.msk [vmem:[%s233 + $0x3a] sm:$0x1] %vm471, %v915
        %v932 = vld [vmem:[%s209 + $0x6] sm:$0x1]
        %v933 = vld [vmem:[%s209 + $0x16] sm:$0x1]
        %v934 = vld [vmem:[%s209 + $0x26] sm:$0x1]
        %v935 = vld [vmem:[%s209 + $0x36] sm:$0x1]
        %v940 = vrot.slane %v933, 7
        %v941 = vsel %vm248, %v940, %v932
        %v942 = vrot.slane %v934, 6
        %v943 = vsel %vm251, %v942, %v941
        %v944 = vrot.slane %v935, 5
        %v945 = vsel %vm254, %v944, %v943
        %v946 = vsel %vm256, %v945, 0
        %948 = vmatprep.subr.mxu0 0.0
        %949 = vmatpush1.msra.mxu0 %v237
        %950 = vmatprep.subr.mxu0 0.0
        %951 = vmatpush1.msra.mxu0 %v238
        %952 = vmatprep.subr.mxu0 0.0
        %953 = vmatpush1.msra.mxu0 0.0
        %954 = vmatprep.subr.mxu0 0.0
        %955 = vmatpush1.msra.mxu0 0.0
        %956 = vmatprep.subr.mxu0 0.0
        %957 = vmatpush1.msra.mxu0 0.0
        %958 = vmatprep.subr.mxu0 0.0
        %959 = vmatpush1.msra.mxu0 0.0
        %960 = vmatprep.subr.mxu0 0.0
        %961 = vmatpush1.msra.mxu0 0.0
        %962 = vmatprep.subr.mxu0 0.0
        %963 = vmatpush1.msra.mxu0 0.0
        %964 = vmatprep.subr.mxu0 0.0
        %965 = vmatpush1.msra.mxu0 0.0
        %966 = vmatprep.subr.mxu0 0.0
        %967 = vmatpush1.msra.mxu0 0.0
        %968 = vmatprep.subr.mxu0 0.0
        %969 = vmatpush1.msra.mxu0 0.0
        %970 = vmatprep.subr.mxu0 0.0
        %971 = vmatpush1.msra.mxu0 0.0
        %972 = vmatprep.subr.mxu0 0.0
        %973 = vmatpush1.msra.mxu0 0.0
        %974 = vmatprep.subr.mxu0 0.0
        %975 = vmatpush1.msra.mxu0 0.0
        %976 = vmatprep.subr.mxu0 0.0
        %977 = vmatpush1.msra.mxu0 0.0
        %978 = vmatprep.subr.mxu0 0.0
        %979 = vmatpush1.msra.mxu0 0.0
        %980 = vmatprep.subr.mxu0 0.0
        %981 = vmatpush1.msra.mxu0 0.0
        %982 = vmatprep.subr.mxu0 0.0
        %983 = vmatpush1.msra.mxu0 0.0
        %984 = vmatprep.subr.mxu0 0.0
        %985 = vmatpush1.msra.mxu0 0.0
        %986 = vmatprep.subr.mxu0 0.0
        %987 = vmatpush1.msra.mxu0 0.0
        %988 = vmatprep.subr.mxu0 0.0
        %989 = vmatpush1.msra.mxu0 0.0
        %990 = vmatprep.subr.mxu0 0.0
        %991 = vmatpush1.msra.mxu0 0.0
        %992 = vmatprep.subr.mxu0 0.0
        %993 = vmatpush1.msra.mxu0 0.0
        %994 = vmatprep.subr.mxu0 0.0
        %995 = vmatpush1.msra.mxu0 0.0
        %996 = vmatprep.subr.mxu0 0.0
        %997 = vmatpush1.msra.mxu0 0.0
        %998 = vmatprep.subr.mxu0 0.0
        %999 = vmatpush1.msra.mxu0 0.0
        %1000 = vmatprep.subr.mxu0 0.0
        %1001 = vmatpush1.msra.mxu0 0.0
        %1002 = vmatprep.subr.mxu0 0.0
        %1003 = vmatpush1.msra.mxu0 0.0
        %1004 = vmatprep.subr.mxu0 0.0
        %1005 = vmatpush1.msra.mxu0 0.0
        %1006 = vmatprep.subr.mxu0 0.0
        %1007 = vmatpush1.msra.mxu0 0.0
        %1008 = vmatprep.subr.mxu0 0.0
        %1009 = vmatpush1.msra.mxu0 0.0
        %1010 = vmatprep.subr.mxu0 0.0
        %1011 = vmatpush1.msra.mxu0 0.0
        %1012 = vmatprep.mubr.f32.mxu0 0.0
        %1013 = vmatmul.mubr.f32.gmra.mrb[0].mxu0 %v946
        %v1014 = vpop.f32.mrb[0].mxu0
        %v1015 = vadd.f32 0.0, %v1014
        %v1016 = vpop.f32.mrb[0].mxu0
        %1017 = vdwg.mxu0
        %v1019 = vsel %vm338, %v1015, 0
        %1021 = vmatprep.subr.mxu0 0.0
        %1022 = vmatpush1.msra.mxu0 %v1019
        %1023 = vmatprep.subr.mxu0 0.0
        %1024 = vmatpush1.msra.mxu0 0.0
        %1025 = vmatprep.subr.mxu0 0.0
        %1026 = vmatpush1.msra.mxu0 0.0
        %1027 = vmatprep.subr.mxu0 0.0
        %1028 = vmatpush1.msra.mxu0 0.0
        %1029 = vmatprep.subr.mxu0 0.0
        %1030 = vmatpush1.msra.mxu0 0.0
        %1031 = vmatprep.subr.mxu0 0.0
        %1032 = vmatpush1.msra.mxu0 0.0
        %1033 = vmatprep.subr.mxu0 0.0
        %1034 = vmatpush1.msra.mxu0 0.0
        %1035 = vmatprep.subr.mxu0 0.0
        %1036 = vmatpush1.msra.mxu0 0.0
        %1037 = vmatprep.subr.mxu0 0.0
        %1038 = vmatpush1.msra.mxu0 0.0
        %1039 = vmatprep.subr.mxu0 0.0
        %1040 = vmatpush1.msra.mxu0 0.0
        %1041 = vmatprep.subr.mxu0 0.0
        %1042 = vmatpush1.msra.mxu0 0.0
        %1043 = vmatprep.subr.mxu0 0.0
        %1044 = vmatpush1.msra.mxu0 0.0
        %1045 = vmatprep.subr.mxu0 0.0
        %1046 = vmatpush1.msra.mxu0 0.0
        %1047 = vmatprep.subr.mxu0 0.0
        %1048 = vmatpush1.msra.mxu0 0.0
        %1049 = vmatprep.subr.mxu0 0.0
        %1050 = vmatpush1.msra.mxu0 0.0
        %1051 = vmatprep.subr.mxu0 0.0
        %1052 = vmatpush1.msra.mxu0 0.0
        %1053 = vmatprep.subr.mxu0 0.0
        %1054 = vmatpush1.msra.mxu0 0.0
        %1055 = vmatprep.subr.mxu0 0.0
        %1056 = vmatpush1.msra.mxu0 0.0
        %1057 = vmatprep.subr.mxu0 0.0
        %1058 = vmatpush1.msra.mxu0 0.0
        %1059 = vmatprep.subr.mxu0 0.0
        %1060 = vmatpush1.msra.mxu0 0.0
        %1061 = vmatprep.subr.mxu0 0.0
        %1062 = vmatpush1.msra.mxu0 0.0
        %1063 = vmatprep.subr.mxu0 0.0
        %1064 = vmatpush1.msra.mxu0 0.0
        %1065 = vmatprep.subr.mxu0 0.0
        %1066 = vmatpush1.msra.mxu0 0.0
        %1067 = vmatprep.subr.mxu0 0.0
        %1068 = vmatpush1.msra.mxu0 0.0
        %1069 = vmatprep.subr.mxu0 0.0
        %1070 = vmatpush1.msra.mxu0 0.0
        %1071 = vmatprep.subr.mxu0 0.0
        %1072 = vmatpush1.msra.mxu0 0.0
        %1073 = vmatprep.subr.mxu0 0.0
        %1074 = vmatpush1.msra.mxu0 0.0
        %1075 = vmatprep.subr.mxu0 0.0
        %1076 = vmatpush1.msra.mxu0 0.0
        %1077 = vmatprep.subr.mxu0 0.0
        %1078 = vmatpush1.msra.mxu0 0.0
        %1079 = vmatprep.subr.mxu0 0.0
        %1080 = vmatpush1.msra.mxu0 0.0
        %1081 = vmatprep.subr.mxu0 0.0
        %1082 = vmatpush1.msra.mxu0 0.0
        %1083 = vmatprep.subr.mxu0 0.0
        %1084 = vmatpush1.msra.mxu0 0.0
        %1085 = vmatprep.mubr.f32.mxu0 0.0
        %1086 = vmatmul.mubr.f32.gmra.mrb[0].mxu0 %v336
        %v1087 = vpop.f32.mrb[0].mxu0
        %v1088 = vadd.f32 %v332, %v1087
        %v1089 = vpop.f32.mrb[0].mxu0
        %1090 = vdwg.mxu0
        %v1091 = vmax.f32 %v1088, 0.0
        %v1093 = vcombine.high %v1091, %v1091
        %v1095 = vunpack.c.l.s4 1966171168
        %v1096 = vunpack.c.0.s8 %v1095
        %v1097 = vlaneseq
        %v1098 = vshrl.u32 %v1097, 7
        %v1099 = vsub.s32 %v1096, %v1098
        %v1100 = vrot.slane %v1091, %v1099
        %v1102 = vunpack.c.l.s4 1966171168
        %v1103 = vunpack.c.0.s8 %v1102
        %v1104 = vlaneseq
        %v1105 = vshrl.u32 %v1104, 7
        %v1106 = vsub.s32 %v1103, %v1105
        %v1107 = vrot.slane %v1093, %v1106
        %v1108 = vcombine.high %v1100, %v1100
        %v1109 = vcombine.high %v1107, %v1107
        %v1111 = vunpack.c.l.s4 1966171168
        %v1112 = vunpack.c.0.s8 %v1111
        %v1113 = vlaneseq
        %v1114 = vshrl.u32 %v1113, 7
        %v1115 = vsub.s32 %v1112, %v1114
        %v1116 = vrot.slane %v1100, %v1115
        %v1118 = vunpack.c.l.s4 1966171168
        %v1119 = vunpack.c.0.s8 %v1118
        %v1120 = vlaneseq
        %v1121 = vshrl.u32 %v1120, 7
        %v1122 = vsub.s32 %v1119, %v1121
        %v1123 = vrot.slane %v1107, %v1122
        %v1125 = vunpack.c.l.s4 1966171168
        %v1126 = vunpack.c.0.s8 %v1125
        %v1127 = vlaneseq
        %v1128 = vshrl.u32 %v1127, 7
        %v1129 = vsub.s32 %v1126, %v1128
        %v1130 = vrot.slane %v1108, %v1129
        %v1132 = vunpack.c.l.s4 1966171168
        %v1133 = vunpack.c.0.s8 %v1132
        %v1134 = vlaneseq
        %v1135 = vshrl.u32 %v1134, 7
        %v1136 = vsub.s32 %v1133, %v1135
        %v1137 = vrot.slane %v1109, %v1136
        %v1138 = vcombine.high %v1116, %v1116
        %v1139 = vcombine.high %v1123, %v1123
        %v1140 = vcombine.high %v1130, %v1130
        %v1141 = vcombine.high %v1137, %v1137
        %1150 = vst.msk [vmem:[%s233 + $0x3] sm:$0x1] %vm471, %v1116
        %1151 = vst.msk [vmem:[%s233 + $0xb] sm:$0x1] %vm471, %v1130
        %1152 = vst.msk [vmem:[%s233 + $0x13] sm:$0x1] %vm471, %v1138
        %1153 = vst.msk [vmem:[%s233 + $0x1b] sm:$0x1] %vm471, %v1140
        %1154 = vst.msk [vmem:[%s233 + $0x23] sm:$0x1] %vm471, %v1123
        %1155 = vst.msk [vmem:[%s233 + $0x2b] sm:$0x1] %vm471, %v1137
        %1156 = vst.msk [vmem:[%s233 + $0x33] sm:$0x1] %vm471, %v1139
        %1157 = vst.msk [vmem:[%s233 + $0x3b] sm:$0x1] %vm471, %v1141
        %v1158 = vld [vmem:[%s209 + $0x8] sm:$0x1]
        %v1159 = vld [vmem:[%s209 + $0x18] sm:$0x1]
        %v1160 = vld [vmem:[%s209 + $0x28] sm:$0x1]
        %v1161 = vld [vmem:[%s209 + $0x38] sm:$0x1]
        %v1166 = vrot.slane %v1159, 7
        %v1167 = vsel %vm248, %v1166, %v1158
        %v1168 = vrot.slane %v1160, 6
        %v1169 = vsel %vm251, %v1168, %v1167
        %v1170 = vrot.slane %v1161, 5
        %v1171 = vsel %vm254, %v1170, %v1169
        %v1172 = vsel %vm256, %v1171, 0
        %1174 = vmatprep.subr.mxu0 0.0
        %1175 = vmatpush1.msra.mxu0 %v237
        %1176 = vmatprep.subr.mxu0 0.0
        %1177 = vmatpush1.msra.mxu0 %v238
        %1178 = vmatprep.subr.mxu0 0.0
        %1179 = vmatpush1.msra.mxu0 0.0
        %1180 = vmatprep.subr.mxu0 0.0
        %1181 = vmatpush1.msra.mxu0 0.0
        %1182 = vmatprep.subr.mxu0 0.0
        %1183 = vmatpush1.msra.mxu0 0.0
        %1184 = vmatprep.subr.mxu0 0.0
        %1185 = vmatpush1.msra.mxu0 0.0
        %1186 = vmatprep.subr.mxu0 0.0
        %1187 = vmatpush1.msra.mxu0 0.0
        %1188 = vmatprep.subr.mxu0 0.0
        %1189 = vmatpush1.msra.mxu0 0.0
        %1190 = vmatprep.subr.mxu0 0.0
        %1191 = vmatpush1.msra.mxu0 0.0
        %1192 = vmatprep.subr.mxu0 0.0
        %1193 = vmatpush1.msra.mxu0 0.0
        %1194 = vmatprep.subr.mxu0 0.0
        %1195 = vmatpush1.msra.mxu0 0.0
        %1196 = vmatprep.subr.mxu0 0.0
        %1197 = vmatpush1.msra.mxu0 0.0
        %1198 = vmatprep.subr.mxu0 0.0
        %1199 = vmatpush1.msra.mxu0 0.0
        %1200 = vmatprep.subr.mxu0 0.0
        %1201 = vmatpush1.msra.mxu0 0.0
        %1202 = vmatprep.subr.mxu0 0.0
        %1203 = vmatpush1.msra.mxu0 0.0
        %1204 = vmatprep.subr.mxu0 0.0
        %1205 = vmatpush1.msra.mxu0 0.0
        %1206 = vmatprep.subr.mxu0 0.0
        %1207 = vmatpush1.msra.mxu0 0.0
        %1208 = vmatprep.subr.mxu0 0.0
        %1209 = vmatpush1.msra.mxu0 0.0
        %1210 = vmatprep.subr.mxu0 0.0
        %1211 = vmatpush1.msra.mxu0 0.0
        %1212 = vmatprep.subr.mxu0 0.0
        %1213 = vmatpush1.msra.mxu0 0.0
        %1214 = vmatprep.subr.mxu0 0.0
        %1215 = vmatpush1.msra.mxu0 0.0
        %1216 = vmatprep.subr.mxu0 0.0
        %1217 = vmatpush1.msra.mxu0 0.0
        %1218 = vmatprep.subr.mxu0 0.0
        %1219 = vmatpush1.msra.mxu0 0.0
        %1220 = vmatprep.subr.mxu0 0.0
        %1221 = vmatpush1.msra.mxu0 0.0
        %1222 = vmatprep.subr.mxu0 0.0
        %1223 = vmatpush1.msra.mxu0 0.0
        %1224 = vmatprep.subr.mxu0 0.0
        %1225 = vmatpush1.msra.mxu0 0.0
        %1226 = vmatprep.subr.mxu0 0.0
        %1227 = vmatpush1.msra.mxu0 0.0
        %1228 = vmatprep.subr.mxu0 0.0
        %1229 = vmatpush1.msra.mxu0 0.0
        %1230 = vmatprep.subr.mxu0 0.0
        %1231 = vmatpush1.msra.mxu0 0.0
        %1232 = vmatprep.subr.mxu0 0.0
        %1233 = vmatpush1.msra.mxu0 0.0
        %1234 = vmatprep.subr.mxu0 0.0
        %1235 = vmatpush1.msra.mxu0 0.0
        %1236 = vmatprep.subr.mxu0 0.0
        %1237 = vmatpush1.msra.mxu0 0.0
        %1238 = vmatprep.mubr.f32.mxu0 0.0
        %1239 = vmatmul.mubr.f32.gmra.mrb[0].mxu0 %v1172
        %v1240 = vpop.f32.mrb[0].mxu0
        %v1241 = vadd.f32 0.0, %v1240
        %v1242 = vpop.f32.mrb[0].mxu0
        %1243 = vdwg.mxu0
        %v1245 = vsel %vm338, %v1241, 0
        %1247 = vmatprep.subr.mxu0 0.0
        %1248 = vmatpush1.msra.mxu0 %v1245
        %1249 = vmatprep.subr.mxu0 0.0
        %1250 = vmatpush1.msra.mxu0 0.0
        %1251 = vmatprep.subr.mxu0 0.0
        %1252 = vmatpush1.msra.mxu0 0.0
        %1253 = vmatprep.subr.mxu0 0.0
        %1254 = vmatpush1.msra.mxu0 0.0
        %1255 = vmatprep.subr.mxu0 0.0
        %1256 = vmatpush1.msra.mxu0 0.0
        %1257 = vmatprep.subr.mxu0 0.0
        %1258 = vmatpush1.msra.mxu0 0.0
        %1259 = vmatprep.subr.mxu0 0.0
        %1260 = vmatpush1.msra.mxu0 0.0
        %1261 = vmatprep.subr.mxu0 0.0
        %1262 = vmatpush1.msra.mxu0 0.0
        %1263 = vmatprep.subr.mxu0 0.0
        %1264 = vmatpush1.msra.mxu0 0.0
        %1265 = vmatprep.subr.mxu0 0.0
        %1266 = vmatpush1.msra.mxu0 0.0
        %1267 = vmatprep.subr.mxu0 0.0
        %1268 = vmatpush1.msra.mxu0 0.0
        %1269 = vmatprep.subr.mxu0 0.0
        %1270 = vmatpush1.msra.mxu0 0.0
        %1271 = vmatprep.subr.mxu0 0.0
        %1272 = vmatpush1.msra.mxu0 0.0
        %1273 = vmatprep.subr.mxu0 0.0
        %1274 = vmatpush1.msra.mxu0 0.0
        %1275 = vmatprep.subr.mxu0 0.0
        %1276 = vmatpush1.msra.mxu0 0.0
        %1277 = vmatprep.subr.mxu0 0.0
        %1278 = vmatpush1.msra.mxu0 0.0
        %1279 = vmatprep.subr.mxu0 0.0
        %1280 = vmatpush1.msra.mxu0 0.0
        %1281 = vmatprep.subr.mxu0 0.0
        %1282 = vmatpush1.msra.mxu0 0.0
        %1283 = vmatprep.subr.mxu0 0.0
        %1284 = vmatpush1.msra.mxu0 0.0
        %1285 = vmatprep.subr.mxu0 0.0
        %1286 = vmatpush1.msra.mxu0 0.0
        %1287 = vmatprep.subr.mxu0 0.0
        %1288 = vmatpush1.msra.mxu0 0.0
        %1289 = vmatprep.subr.mxu0 0.0
        %1290 = vmatpush1.msra.mxu0 0.0
        %1291 = vmatprep.subr.mxu0 0.0
        %1292 = vmatpush1.msra.mxu0 0.0
        %1293 = vmatprep.subr.mxu0 0.0
        %1294 = vmatpush1.msra.mxu0 0.0
        %1295 = vmatprep.subr.mxu0 0.0
        %1296 = vmatpush1.msra.mxu0 0.0
        %1297 = vmatprep.subr.mxu0 0.0
        %1298 = vmatpush1.msra.mxu0 0.0
        %1299 = vmatprep.subr.mxu0 0.0
        %1300 = vmatpush1.msra.mxu0 0.0
        %1301 = vmatprep.subr.mxu0 0.0
        %1302 = vmatpush1.msra.mxu0 0.0
        %1303 = vmatprep.subr.mxu0 0.0
        %1304 = vmatpush1.msra.mxu0 0.0
        %1305 = vmatprep.subr.mxu0 0.0
        %1306 = vmatpush1.msra.mxu0 0.0
        %1307 = vmatprep.subr.mxu0 0.0
        %1308 = vmatpush1.msra.mxu0 0.0
        %1309 = vmatprep.subr.mxu0 0.0
        %1310 = vmatpush1.msra.mxu0 0.0
        %1311 = vmatprep.mubr.f32.mxu0 0.0
        %1312 = vmatmul.mubr.f32.gmra.mrb[0].mxu0 %v336
        %v1313 = vpop.f32.mrb[0].mxu0
        %v1314 = vadd.f32 %v332, %v1313
        %v1315 = vpop.f32.mrb[0].mxu0
        %1316 = vdwg.mxu0
        %v1317 = vmax.f32 %v1314, 0.0
        %v1319 = vcombine.high %v1317, %v1317
        %v1321 = vunpack.c.l.s4 1966171168
        %v1322 = vunpack.c.0.s8 %v1321
        %v1323 = vlaneseq
        %v1324 = vshrl.u32 %v1323, 7
        %v1325 = vsub.s32 %v1322, %v1324
        %v1326 = vrot.slane %v1317, %v1325
        %v1328 = vunpack.c.l.s4 1966171168
        %v1329 = vunpack.c.0.s8 %v1328
        %v1330 = vlaneseq
        %v1331 = vshrl.u32 %v1330, 7
        %v1332 = vsub.s32 %v1329, %v1331
        %v1333 = vrot.slane %v1319, %v1332
        %v1334 = vcombine.high %v1326, %v1326
        %v1335 = vcombine.high %v1333, %v1333
        %v1337 = vunpack.c.l.s4 1966171168
        %v1338 = vunpack.c.0.s8 %v1337
        %v1339 = vlaneseq
        %v1340 = vshrl.u32 %v1339, 7
        %v1341 = vsub.s32 %v1338, %v1340
        %v1342 = vrot.slane %v1326, %v1341
        %v1344 = vunpack.c.l.s4 1966171168
        %v1345 = vunpack.c.0.s8 %v1344
        %v1346 = vlaneseq
        %v1347 = vshrl.u32 %v1346, 7
        %v1348 = vsub.s32 %v1345, %v1347
        %v1349 = vrot.slane %v1333, %v1348
        %v1351 = vunpack.c.l.s4 1966171168
        %v1352 = vunpack.c.0.s8 %v1351
        %v1353 = vlaneseq
        %v1354 = vshrl.u32 %v1353, 7
        %v1355 = vsub.s32 %v1352, %v1354
        %v1356 = vrot.slane %v1334, %v1355
        %v1358 = vunpack.c.l.s4 1966171168
        %v1359 = vunpack.c.0.s8 %v1358
        %v1360 = vlaneseq
        %v1361 = vshrl.u32 %v1360, 7
        %v1362 = vsub.s32 %v1359, %v1361
        %v1363 = vrot.slane %v1335, %v1362
        %v1364 = vcombine.high %v1342, %v1342
        %v1365 = vcombine.high %v1349, %v1349
        %v1366 = vcombine.high %v1356, %v1356
        %v1367 = vcombine.high %v1363, %v1363
        %1376 = vst.msk [vmem:[%s233 + $0x4] sm:$0x1] %vm471, %v1342
        %1377 = vst.msk [vmem:[%s233 + $0xc] sm:$0x1] %vm471, %v1356
        %1378 = vst.msk [vmem:[%s233 + $0x14] sm:$0x1] %vm471, %v1364
        %1379 = vst.msk [vmem:[%s233 + $0x1c] sm:$0x1] %vm471, %v1366
        %1380 = vst.msk [vmem:[%s233 + $0x24] sm:$0x1] %vm471, %v1349
        %1381 = vst.msk [vmem:[%s233 + $0x2c] sm:$0x1] %vm471, %v1363
        %1382 = vst.msk [vmem:[%s233 + $0x34] sm:$0x1] %vm471, %v1365
        %1383 = vst.msk [vmem:[%s233 + $0x3c] sm:$0x1] %vm471, %v1367
        %v1384 = vld [vmem:[%s209 + $0xa] sm:$0x1]
        %v1385 = vld [vmem:[%s209 + $0x1a] sm:$0x1]
        %v1386 = vld [vmem:[%s209 + $0x2a] sm:$0x1]
        %v1387 = vld [vmem:[%s209 + $0x3a] sm:$0x1]
        %v1392 = vrot.slane %v1385, 7
        %v1393 = vsel %vm248, %v1392, %v1384
        %v1394 = vrot.slane %v1386, 6
        %v1395 = vsel %vm251, %v1394, %v1393
        %v1396 = vrot.slane %v1387, 5
        %v1397 = vsel %vm254, %v1396, %v1395
        %v1398 = vsel %vm256, %v1397, 0
        %1400 = vmatprep.subr.mxu0 0.0
        %1401 = vmatpush1.msra.mxu0 %v237
        %1402 = vmatprep.subr.mxu0 0.0
        %1403 = vmatpush1.msra.mxu0 %v238
        %1404 = vmatprep.subr.mxu0 0.0
        %1405 = vmatpush1.msra.mxu0 0.0
        %1406 = vmatprep.subr.mxu0 0.0
        %1407 = vmatpush1.msra.mxu0 0.0
        %1408 = vmatprep.subr.mxu0 0.0
        %1409 = vmatpush1.msra.mxu0 0.0
        %1410 = vmatprep.subr.mxu0 0.0
        %1411 = vmatpush1.msra.mxu0 0.0
        %1412 = vmatprep.subr.mxu0 0.0
        %1413 = vmatpush1.msra.mxu0 0.0
        %1414 = vmatprep.subr.mxu0 0.0
        %1415 = vmatpush1.msra.mxu0 0.0
        %1416 = vmatprep.subr.mxu0 0.0
        %1417 = vmatpush1.msra.mxu0 0.0
        %1418 = vmatprep.subr.mxu0 0.0
        %1419 = vmatpush1.msra.mxu0 0.0
        %1420 = vmatprep.subr.mxu0 0.0
        %1421 = vmatpush1.msra.mxu0 0.0
        %1422 = vmatprep.subr.mxu0 0.0
        %1423 = vmatpush1.msra.mxu0 0.0
        %1424 = vmatprep.subr.mxu0 0.0
        %1425 = vmatpush1.msra.mxu0 0.0
        %1426 = vmatprep.subr.mxu0 0.0
        %1427 = vmatpush1.msra.mxu0 0.0
        %1428 = vmatprep.subr.mxu0 0.0
        %1429 = vmatpush1.msra.mxu0 0.0
        %1430 = vmatprep.subr.mxu0 0.0
        %1431 = vmatpush1.msra.mxu0 0.0
        %1432 = vmatprep.subr.mxu0 0.0
        %1433 = vmatpush1.msra.mxu0 0.0
        %1434 = vmatprep.subr.mxu0 0.0
        %1435 = vmatpush1.msra.mxu0 0.0
        %1436 = vmatprep.subr.mxu0 0.0
        %1437 = vmatpush1.msra.mxu0 0.0
        %1438 = vmatprep.subr.mxu0 0.0
        %1439 = vmatpush1.msra.mxu0 0.0
        %1440 = vmatprep.subr.mxu0 0.0
        %1441 = vmatpush1.msra.mxu0 0.0
        %1442 = vmatprep.subr.mxu0 0.0
        %1443 = vmatpush1.msra.mxu0 0.0
        %1444 = vmatprep.subr.mxu0 0.0
        %1445 = vmatpush1.msra.mxu0 0.0
        %1446 = vmatprep.subr.mxu0 0.0
        %1447 = vmatpush1.msra.mxu0 0.0
        %1448 = vmatprep.subr.mxu0 0.0
        %1449 = vmatpush1.msra.mxu0 0.0
        %1450 = vmatprep.subr.mxu0 0.0
        %1451 = vmatpush1.msra.mxu0 0.0
        %1452 = vmatprep.subr.mxu0 0.0
        %1453 = vmatpush1.msra.mxu0 0.0
        %1454 = vmatprep.subr.mxu0 0.0
        %1455 = vmatpush1.msra.mxu0 0.0
        %1456 = vmatprep.subr.mxu0 0.0
        %1457 = vmatpush1.msra.mxu0 0.0
        %1458 = vmatprep.subr.mxu0 0.0
        %1459 = vmatpush1.msra.mxu0 0.0
        %1460 = vmatprep.subr.mxu0 0.0
        %1461 = vmatpush1.msra.mxu0 0.0
        %1462 = vmatprep.subr.mxu0 0.0
        %1463 = vmatpush1.msra.mxu0 0.0
        %1464 = vmatprep.mubr.f32.mxu0 0.0
        %1465 = vmatmul.mubr.f32.gmra.mrb[0].mxu0 %v1398
        %v1466 = vpop.f32.mrb[0].mxu0
        %v1467 = vadd.f32 0.0, %v1466
        %v1468 = vpop.f32.mrb[0].mxu0
        %1469 = vdwg.mxu0
        %v1471 = vsel %vm338, %v1467, 0
        %1473 = vmatprep.subr.mxu0 0.0
        %1474 = vmatpush1.msra.mxu0 %v1471
        %1475 = vmatprep.subr.mxu0 0.0
        %1476 = vmatpush1.msra.mxu0 0.0
        %1477 = vmatprep.subr.mxu0 0.0
        %1478 = vmatpush1.msra.mxu0 0.0
        %1479 = vmatprep.subr.mxu0 0.0
        %1480 = vmatpush1.msra.mxu0 0.0
        %1481 = vmatprep.subr.mxu0 0.0
        %1482 = vmatpush1.msra.mxu0 0.0
        %1483 = vmatprep.subr.mxu0 0.0
        %1484 = vmatpush1.msra.mxu0 0.0
        %1485 = vmatprep.subr.mxu0 0.0
        %1486 = vmatpush1.msra.mxu0 0.0
        %1487 = vmatprep.subr.mxu0 0.0
        %1488 = vmatpush1.msra.mxu0 0.0
        %1489 = vmatprep.subr.mxu0 0.0
        %1490 = vmatpush1.msra.mxu0 0.0
        %1491 = vmatprep.subr.mxu0 0.0
        %1492 = vmatpush1.msra.mxu0 0.0
        %1493 = vmatprep.subr.mxu0 0.0
        %1494 = vmatpush1.msra.mxu0 0.0
        %1495 = vmatprep.subr.mxu0 0.0
        %1496 = vmatpush1.msra.mxu0 0.0
        %1497 = vmatprep.subr.mxu0 0.0
        %1498 = vmatpush1.msra.mxu0 0.0
        %1499 = vmatprep.subr.mxu0 0.0
        %1500 = vmatpush1.msra.mxu0 0.0
        %1501 = vmatprep.subr.mxu0 0.0
        %1502 = vmatpush1.msra.mxu0 0.0
        %1503 = vmatprep.subr.mxu0 0.0
        %1504 = vmatpush1.msra.mxu0 0.0
        %1505 = vmatprep.subr.mxu0 0.0
        %1506 = vmatpush1.msra.mxu0 0.0
        %1507 = vmatprep.subr.mxu0 0.0
        %1508 = vmatpush1.msra.mxu0 0.0
        %1509 = vmatprep.subr.mxu0 0.0
        %1510 = vmatpush1.msra.mxu0 0.0
        %1511 = vmatprep.subr.mxu0 0.0
        %1512 = vmatpush1.msra.mxu0 0.0
        %1513 = vmatprep.subr.mxu0 0.0
        %1514 = vmatpush1.msra.mxu0 0.0
        %1515 = vmatprep.subr.mxu0 0.0
        %1516 = vmatpush1.msra.mxu0 0.0
        %1517 = vmatprep.subr.mxu0 0.0
        %1518 = vmatpush1.msra.mxu0 0.0
        %1519 = vmatprep.subr.mxu0 0.0
        %1520 = vmatpush1.msra.mxu0 0.0
        %1521 = vmatprep.subr.mxu0 0.0
        %1522 = vmatpush1.msra.mxu0 0.0
        %1523 = vmatprep.subr.mxu0 0.0
        %1524 = vmatpush1.msra.mxu0 0.0
        %1525 = vmatprep.subr.mxu0 0.0
        %1526 = vmatpush1.msra.mxu0 0.0
        %1527 = vmatprep.subr.mxu0 0.0
        %1528 = vmatpush1.msra.mxu0 0.0
        %1529 = vmatprep.subr.mxu0 0.0
        %1530 = vmatpush1.msra.mxu0 0.0
        %1531 = vmatprep.subr.mxu0 0.0
        %1532 = vmatpush1.msra.mxu0 0.0
        %1533 = vmatprep.subr.mxu0 0.0
        %1534 = vmatpush1.msra.mxu0 0.0
        %1535 = vmatprep.subr.mxu0 0.0
        %1536 = vmatpush1.msra.mxu0 0.0
        %1537 = vmatprep.mubr.f32.mxu0 0.0
        %1538 = vmatmul.mubr.f32.gmra.mrb[0].mxu0 %v336
        %v1539 = vpop.f32.mrb[0].mxu0
        %v1540 = vadd.f32 %v332, %v1539
        %v1541 = vpop.f32.mrb[0].mxu0
        %1542 = vdwg.mxu0
        %v1543 = vmax.f32 %v1540, 0.0
        %v1545 = vcombine.high %v1543, %v1543
        %v1547 = vunpack.c.l.s4 1966171168
        %v1548 = vunpack.c.0.s8 %v1547
        %v1549 = vlaneseq
        %v1550 = vshrl.u32 %v1549, 7
        %v1551 = vsub.s32 %v1548, %v1550
        %v1552 = vrot.slane %v1543, %v1551
        %v1554 = vunpack.c.l.s4 1966171168
        %v1555 = vunpack.c.0.s8 %v1554
        %v1556 = vlaneseq
        %v1557 = vshrl.u32 %v1556, 7
        %v1558 = vsub.s32 %v1555, %v1557
        %v1559 = vrot.slane %v1545, %v1558
        %v1560 = vcombine.high %v1552, %v1552
        %v1561 = vcombine.high %v1559, %v1559
        %v1563 = vunpack.c.l.s4 1966171168
        %v1564 = vunpack.c.0.s8 %v1563
        %v1565 = vlaneseq
        %v1566 = vshrl.u32 %v1565, 7
        %v1567 = vsub.s32 %v1564, %v1566
        %v1568 = vrot.slane %v1552, %v1567
        %v1570 = vunpack.c.l.s4 1966171168
        %v1571 = vunpack.c.0.s8 %v1570
        %v1572 = vlaneseq
        %v1573 = vshrl.u32 %v1572, 7
        %v1574 = vsub.s32 %v1571, %v1573
        %v1575 = vrot.slane %v1559, %v1574
        %v1577 = vunpack.c.l.s4 1966171168
        %v1578 = vunpack.c.0.s8 %v1577
        %v1579 = vlaneseq
        %v1580 = vshrl.u32 %v1579, 7
        %v1581 = vsub.s32 %v1578, %v1580
        %v1582 = vrot.slane %v1560, %v1581
        %v1584 = vunpack.c.l.s4 1966171168
        %v1585 = vunpack.c.0.s8 %v1584
        %v1586 = vlaneseq
        %v1587 = vshrl.u32 %v1586, 7
        %v1588 = vsub.s32 %v1585, %v1587
        %v1589 = vrot.slane %v1561, %v1588
        %v1590 = vcombine.high %v1568, %v1568
        %v1591 = vcombine.high %v1575, %v1575
        %v1592 = vcombine.high %v1582, %v1582
        %v1593 = vcombine.high %v1589, %v1589
        %1602 = vst.msk [vmem:[%s233 + $0x5] sm:$0x1] %vm471, %v1568
        %1603 = vst.msk [vmem:[%s233 + $0xd] sm:$0x1] %vm471, %v1582
        %1604 = vst.msk [vmem:[%s233 + $0x15] sm:$0x1] %vm471, %v1590
        %1605 = vst.msk [vmem:[%s233 + $0x1d] sm:$0x1] %vm471, %v1592
        %1606 = vst.msk [vmem:[%s233 + $0x25] sm:$0x1] %vm471, %v1575
        %1607 = vst.msk [vmem:[%s233 + $0x2d] sm:$0x1] %vm471, %v1589
        %1608 = vst.msk [vmem:[%s233 + $0x35] sm:$0x1] %vm471, %v1591
        %1609 = vst.msk [vmem:[%s233 + $0x3d] sm:$0x1] %vm471, %v1593
        %v1610 = vld [vmem:[%s209 + $0xc] sm:$0x1]
        %v1611 = vld [vmem:[%s209 + $0x1c] sm:$0x1]
        %v1612 = vld [vmem:[%s209 + $0x2c] sm:$0x1]
        %v1613 = vld [vmem:[%s209 + $0x3c] sm:$0x1]
        %v1618 = vrot.slane %v1611, 7
        %v1619 = vsel %vm248, %v1618, %v1610
        %v1620 = vrot.slane %v1612, 6
        %v1621 = vsel %vm251, %v1620, %v1619
        %v1622 = vrot.slane %v1613, 5
        %v1623 = vsel %vm254, %v1622, %v1621
        %v1624 = vsel %vm256, %v1623, 0
        %1626 = vmatprep.subr.mxu0 0.0
        %1627 = vmatpush1.msra.mxu0 %v237
        %1628 = vmatprep.subr.mxu0 0.0
        %1629 = vmatpush1.msra.mxu0 %v238
        %1630 = vmatprep.subr.mxu0 0.0
        %1631 = vmatpush1.msra.mxu0 0.0
        %1632 = vmatprep.subr.mxu0 0.0
        %1633 = vmatpush1.msra.mxu0 0.0
        %1634 = vmatprep.subr.mxu0 0.0
        %1635 = vmatpush1.msra.mxu0 0.0
        %1636 = vmatprep.subr.mxu0 0.0
        %1637 = vmatpush1.msra.mxu0 0.0
        %1638 = vmatprep.subr.mxu0 0.0
        %1639 = vmatpush1.msra.mxu0 0.0
        %1640 = vmatprep.subr.mxu0 0.0
        %1641 = vmatpush1.msra.mxu0 0.0
        %1642 = vmatprep.subr.mxu0 0.0
        %1643 = vmatpush1.msra.mxu0 0.0
        %1644 = vmatprep.subr.mxu0 0.0
        %1645 = vmatpush1.msra.mxu0 0.0
        %1646 = vmatprep.subr.mxu0 0.0
        %1647 = vmatpush1.msra.mxu0 0.0
        %1648 = vmatprep.subr.mxu0 0.0
        %1649 = vmatpush1.msra.mxu0 0.0
        %1650 = vmatprep.subr.mxu0 0.0
        %1651 = vmatpush1.msra.mxu0 0.0
        %1652 = vmatprep.subr.mxu0 0.0
        %1653 = vmatpush1.msra.mxu0 0.0
        %1654 = vmatprep.subr.mxu0 0.0
        %1655 = vmatpush1.msra.mxu0 0.0
        %1656 = vmatprep.subr.mxu0 0.0
        %1657 = vmatpush1.msra.mxu0 0.0
        %1658 = vmatprep.subr.mxu0 0.0
        %1659 = vmatpush1.msra.mxu0 0.0
        %1660 = vmatprep.subr.mxu0 0.0
        %1661 = vmatpush1.msra.mxu0 0.0
        %1662 = vmatprep.subr.mxu0 0.0
        %1663 = vmatpush1.msra.mxu0 0.0
        %1664 = vmatprep.subr.mxu0 0.0
        %1665 = vmatpush1.msra.mxu0 0.0
        %1666 = vmatprep.subr.mxu0 0.0
        %1667 = vmatpush1.msra.mxu0 0.0
        %1668 = vmatprep.subr.mxu0 0.0
        %1669 = vmatpush1.msra.mxu0 0.0
        %1670 = vmatprep.subr.mxu0 0.0
        %1671 = vmatpush1.msra.mxu0 0.0
        %1672 = vmatprep.subr.mxu0 0.0
        %1673 = vmatpush1.msra.mxu0 0.0
        %1674 = vmatprep.subr.mxu0 0.0
        %1675 = vmatpush1.msra.mxu0 0.0
        %1676 = vmatprep.subr.mxu0 0.0
        %1677 = vmatpush1.msra.mxu0 0.0
        %1678 = vmatprep.subr.mxu0 0.0
        %1679 = vmatpush1.msra.mxu0 0.0
        %1680 = vmatprep.subr.mxu0 0.0
        %1681 = vmatpush1.msra.mxu0 0.0
        %1682 = vmatprep.subr.mxu0 0.0
        %1683 = vmatpush1.msra.mxu0 0.0
        %1684 = vmatprep.subr.mxu0 0.0
        %1685 = vmatpush1.msra.mxu0 0.0
        %1686 = vmatprep.subr.mxu0 0.0
        %1687 = vmatpush1.msra.mxu0 0.0
        %1688 = vmatprep.subr.mxu0 0.0
        %1689 = vmatpush1.msra.mxu0 0.0
        %1690 = vmatprep.mubr.f32.mxu0 0.0
        %1691 = vmatmul.mubr.f32.gmra.mrb[0].mxu0 %v1624
        %v1692 = vpop.f32.mrb[0].mxu0
        %v1693 = vadd.f32 0.0, %v1692
        %v1694 = vpop.f32.mrb[0].mxu0
        %1695 = vdwg.mxu0
        %v1697 = vsel %vm338, %v1693, 0
        %1699 = vmatprep.subr.mxu0 0.0
        %1700 = vmatpush1.msra.mxu0 %v1697
        %1701 = vmatprep.subr.mxu0 0.0
        %1702 = vmatpush1.msra.mxu0 0.0
        %1703 = vmatprep.subr.mxu0 0.0
        %1704 = vmatpush1.msra.mxu0 0.0
        %1705 = vmatprep.subr.mxu0 0.0
        %1706 = vmatpush1.msra.mxu0 0.0
        %1707 = vmatprep.subr.mxu0 0.0
        %1708 = vmatpush1.msra.mxu0 0.0
        %1709 = vmatprep.subr.mxu0 0.0
        %1710 = vmatpush1.msra.mxu0 0.0
        %1711 = vmatprep.subr.mxu0 0.0
        %1712 = vmatpush1.msra.mxu0 0.0
        %1713 = vmatprep.subr.mxu0 0.0
        %1714 = vmatpush1.msra.mxu0 0.0
        %1715 = vmatprep.subr.mxu0 0.0
        %1716 = vmatpush1.msra.mxu0 0.0
        %1717 = vmatprep.subr.mxu0 0.0
        %1718 = vmatpush1.msra.mxu0 0.0
        %1719 = vmatprep.subr.mxu0 0.0
        %1720 = vmatpush1.msra.mxu0 0.0
        %1721 = vmatprep.subr.mxu0 0.0
        %1722 = vmatpush1.msra.mxu0 0.0
        %1723 = vmatprep.subr.mxu0 0.0
        %1724 = vmatpush1.msra.mxu0 0.0
        %1725 = vmatprep.subr.mxu0 0.0
        %1726 = vmatpush1.msra.mxu0 0.0
        %1727 = vmatprep.subr.mxu0 0.0
        %1728 = vmatpush1.msra.mxu0 0.0
        %1729 = vmatprep.subr.mxu0 0.0
        %1730 = vmatpush1.msra.mxu0 0.0
        %1731 = vmatprep.subr.mxu0 0.0
        %1732 = vmatpush1.msra.mxu0 0.0
        %1733 = vmatprep.subr.mxu0 0.0
        %1734 = vmatpush1.msra.mxu0 0.0
        %1735 = vmatprep.subr.mxu0 0.0
        %1736 = vmatpush1.msra.mxu0 0.0
        %1737 = vmatprep.subr.mxu0 0.0
        %1738 = vmatpush1.msra.mxu0 0.0
        %1739 = vmatprep.subr.mxu0 0.0
        %1740 = vmatpush1.msra.mxu0 0.0
        %1741 = vmatprep.subr.mxu0 0.0
        %1742 = vmatpush1.msra.mxu0 0.0
        %1743 = vmatprep.subr.mxu0 0.0
        %1744 = vmatpush1.msra.mxu0 0.0
        %1745 = vmatprep.subr.mxu0 0.0
        %1746 = vmatpush1.msra.mxu0 0.0
        %1747 = vmatprep.subr.mxu0 0.0
        %1748 = vmatpush1.msra.mxu0 0.0
        %1749 = vmatprep.subr.mxu0 0.0
        %1750 = vmatpush1.msra.mxu0 0.0
        %1751 = vmatprep.subr.mxu0 0.0
        %1752 = vmatpush1.msra.mxu0 0.0
        %1753 = vmatprep.subr.mxu0 0.0
        %1754 = vmatpush1.msra.mxu0 0.0
        %1755 = vmatprep.subr.mxu0 0.0
        %1756 = vmatpush1.msra.mxu0 0.0
        %1757 = vmatprep.subr.mxu0 0.0
        %1758 = vmatpush1.msra.mxu0 0.0
        %1759 = vmatprep.subr.mxu0 0.0
        %1760 = vmatpush1.msra.mxu0 0.0
        %1761 = vmatprep.subr.mxu0 0.0
        %1762 = vmatpush1.msra.mxu0 0.0
        %1763 = vmatprep.mubr.f32.mxu0 0.0
        %1764 = vmatmul.mubr.f32.gmra.mrb[0].mxu0 %v336
        %v1765 = vpop.f32.mrb[0].mxu0
        %v1766 = vadd.f32 %v332, %v1765
        %v1767 = vpop.f32.mrb[0].mxu0
        %1768 = vdwg.mxu0
        %v1769 = vmax.f32 %v1766, 0.0
        %v1771 = vcombine.high %v1769, %v1769
        %v1773 = vunpack.c.l.s4 1966171168
        %v1774 = vunpack.c.0.s8 %v1773
        %v1775 = vlaneseq
        %v1776 = vshrl.u32 %v1775, 7
        %v1777 = vsub.s32 %v1774, %v1776
        %v1778 = vrot.slane %v1769, %v1777
        %v1780 = vunpack.c.l.s4 1966171168
        %v1781 = vunpack.c.0.s8 %v1780
        %v1782 = vlaneseq
        %v1783 = vshrl.u32 %v1782, 7
        %v1784 = vsub.s32 %v1781, %v1783
        %v1785 = vrot.slane %v1771, %v1784
        %v1786 = vcombine.high %v1778, %v1778
        %v1787 = vcombine.high %v1785, %v1785
        %v1789 = vunpack.c.l.s4 1966171168
        %v1790 = vunpack.c.0.s8 %v1789
        %v1791 = vlaneseq
        %v1792 = vshrl.u32 %v1791, 7
        %v1793 = vsub.s32 %v1790, %v1792
        %v1794 = vrot.slane %v1778, %v1793
        %v1796 = vunpack.c.l.s4 1966171168
        %v1797 = vunpack.c.0.s8 %v1796
        %v1798 = vlaneseq
        %v1799 = vshrl.u32 %v1798, 7
        %v1800 = vsub.s32 %v1797, %v1799
        %v1801 = vrot.slane %v1785, %v1800
        %v1803 = vunpack.c.l.s4 1966171168
        %v1804 = vunpack.c.0.s8 %v1803
        %v1805 = vlaneseq
        %v1806 = vshrl.u32 %v1805, 7
        %v1807 = vsub.s32 %v1804, %v1806
        %v1808 = vrot.slane %v1786, %v1807
        %v1810 = vunpack.c.l.s4 1966171168
        %v1811 = vunpack.c.0.s8 %v1810
        %v1812 = vlaneseq
        %v1813 = vshrl.u32 %v1812, 7
        %v1814 = vsub.s32 %v1811, %v1813
        %v1815 = vrot.slane %v1787, %v1814
        %v1816 = vcombine.high %v1794, %v1794
        %v1817 = vcombine.high %v1801, %v1801
        %v1818 = vcombine.high %v1808, %v1808
        %v1819 = vcombine.high %v1815, %v1815
        %1828 = vst.msk [vmem:[%s233 + $0x6] sm:$0x1] %vm471, %v1794
        %1829 = vst.msk [vmem:[%s233 + $0xe] sm:$0x1] %vm471, %v1808
        %1830 = vst.msk [vmem:[%s233 + $0x16] sm:$0x1] %vm471, %v1816
        %1831 = vst.msk [vmem:[%s233 + $0x1e] sm:$0x1] %vm471, %v1818
        %1832 = vst.msk [vmem:[%s233 + $0x26] sm:$0x1] %vm471, %v1801
        %1833 = vst.msk [vmem:[%s233 + $0x2e] sm:$0x1] %vm471, %v1815
        %1834 = vst.msk [vmem:[%s233 + $0x36] sm:$0x1] %vm471, %v1817
        %1835 = vst.msk [vmem:[%s233 + $0x3e] sm:$0x1] %vm471, %v1819
        %v1836 = vld [vmem:[%s209 + $0xe] sm:$0x1]
        %v1837 = vld [vmem:[%s209 + $0x1e] sm:$0x1]
        %v1838 = vld [vmem:[%s209 + $0x2e] sm:$0x1]
        %v1839 = vld [vmem:[%s209 + $0x3e] sm:$0x1]
        %v1844 = vrot.slane %v1837, 7
        %v1845 = vsel %vm248, %v1844, %v1836
        %v1846 = vrot.slane %v1838, 6
        %v1847 = vsel %vm251, %v1846, %v1845
        %v1848 = vrot.slane %v1839, 5
        %v1849 = vsel %vm254, %v1848, %v1847
        %v1850 = vsel %vm256, %v1849, 0
        %1852 = vmatprep.subr.mxu0 0.0
        %1853 = vmatpush1.msra.mxu0 %v237
        %1854 = vmatprep.subr.mxu0 0.0
        %1855 = vmatpush1.msra.mxu0 %v238
        %1856 = vmatprep.subr.mxu0 0.0
        %1857 = vmatpush1.msra.mxu0 0.0
        %1858 = vmatprep.subr.mxu0 0.0
        %1859 = vmatpush1.msra.mxu0 0.0
        %1860 = vmatprep.subr.mxu0 0.0
        %1861 = vmatpush1.msra.mxu0 0.0
        %1862 = vmatprep.subr.mxu0 0.0
        %1863 = vmatpush1.msra.mxu0 0.0
        %1864 = vmatprep.subr.mxu0 0.0
        %1865 = vmatpush1.msra.mxu0 0.0
        %1866 = vmatprep.subr.mxu0 0.0
        %1867 = vmatpush1.msra.mxu0 0.0
        %1868 = vmatprep.subr.mxu0 0.0
        %1869 = vmatpush1.msra.mxu0 0.0
        %1870 = vmatprep.subr.mxu0 0.0
        %1871 = vmatpush1.msra.mxu0 0.0
        %1872 = vmatprep.subr.mxu0 0.0
        %1873 = vmatpush1.msra.mxu0 0.0
        %1874 = vmatprep.subr.mxu0 0.0
        %1875 = vmatpush1.msra.mxu0 0.0
        %1876 = vmatprep.subr.mxu0 0.0
        %1877 = vmatpush1.msra.mxu0 0.0
        %1878 = vmatprep.subr.mxu0 0.0
        %1879 = vmatpush1.msra.mxu0 0.0
        %1880 = vmatprep.subr.mxu0 0.0
        %1881 = vmatpush1.msra.mxu0 0.0
        %1882 = vmatprep.subr.mxu0 0.0
        %1883 = vmatpush1.msra.mxu0 0.0
        %1884 = vmatprep.subr.mxu0 0.0
        %1885 = vmatpush1.msra.mxu0 0.0
        %1886 = vmatprep.subr.mxu0 0.0
        %1887 = vmatpush1.msra.mxu0 0.0
        %1888 = vmatprep.subr.mxu0 0.0
        %1889 = vmatpush1.msra.mxu0 0.0
        %1890 = vmatprep.subr.mxu0 0.0
        %1891 = vmatpush1.msra.mxu0 0.0
        %1892 = vmatprep.subr.mxu0 0.0
        %1893 = vmatpush1.msra.mxu0 0.0
        %1894 = vmatprep.subr.mxu0 0.0
        %1895 = vmatpush1.msra.mxu0 0.0
        %1896 = vmatprep.subr.mxu0 0.0
        %1897 = vmatpush1.msra.mxu0 0.0
        %1898 = vmatprep.subr.mxu0 0.0
        %1899 = vmatpush1.msra.mxu0 0.0
        %1900 = vmatprep.subr.mxu0 0.0
        %1901 = vmatpush1.msra.mxu0 0.0
        %1902 = vmatprep.subr.mxu0 0.0
        %1903 = vmatpush1.msra.mxu0 0.0
        %1904 = vmatprep.subr.mxu0 0.0
        %1905 = vmatpush1.msra.mxu0 0.0
        %1906 = vmatprep.subr.mxu0 0.0
        %1907 = vmatpush1.msra.mxu0 0.0
        %1908 = vmatprep.subr.mxu0 0.0
        %1909 = vmatpush1.msra.mxu0 0.0
        %1910 = vmatprep.subr.mxu0 0.0
        %1911 = vmatpush1.msra.mxu0 0.0
        %1912 = vmatprep.subr.mxu0 0.0
        %1913 = vmatpush1.msra.mxu0 0.0
        %1914 = vmatprep.subr.mxu0 0.0
        %1915 = vmatpush1.msra.mxu0 0.0
        %1916 = vmatprep.mubr.f32.mxu0 0.0
        %1917 = vmatmul.mubr.f32.gmra.mrb[0].mxu0 %v1850
        %v1918 = vpop.f32.mrb[0].mxu0
        %v1919 = vadd.f32 0.0, %v1918
        %v1920 = vpop.f32.mrb[0].mxu0
        %1921 = vdwg.mxu0
        %v1923 = vsel %vm338, %v1919, 0
        %1925 = vmatprep.subr.mxu0 0.0
        %1926 = vmatpush1.msra.mxu0 %v1923
        %1927 = vmatprep.subr.mxu0 0.0
        %1928 = vmatpush1.msra.mxu0 0.0
        %1929 = vmatprep.subr.mxu0 0.0
        %1930 = vmatpush1.msra.mxu0 0.0
        %1931 = vmatprep.subr.mxu0 0.0
        %1932 = vmatpush1.msra.mxu0 0.0
        %1933 = vmatprep.subr.mxu0 0.0
        %1934 = vmatpush1.msra.mxu0 0.0
        %1935 = vmatprep.subr.mxu0 0.0
        %1936 = vmatpush1.msra.mxu0 0.0
        %1937 = vmatprep.subr.mxu0 0.0
        %1938 = vmatpush1.msra.mxu0 0.0
        %1939 = vmatprep.subr.mxu0 0.0
        %1940 = vmatpush1.msra.mxu0 0.0
        %1941 = vmatprep.subr.mxu0 0.0
        %1942 = vmatpush1.msra.mxu0 0.0
        %1943 = vmatprep.subr.mxu0 0.0
        %1944 = vmatpush1.msra.mxu0 0.0
        %1945 = vmatprep.subr.mxu0 0.0
        %1946 = vmatpush1.msra.mxu0 0.0
        %1947 = vmatprep.subr.mxu0 0.0
        %1948 = vmatpush1.msra.mxu0 0.0
        %1949 = vmatprep.subr.mxu0 0.0
        %1950 = vmatpush1.msra.mxu0 0.0
        %1951 = vmatprep.subr.mxu0 0.0
        %1952 = vmatpush1.msra.mxu0 0.0
        %1953 = vmatprep.subr.mxu0 0.0
        %1954 = vmatpush1.msra.mxu0 0.0
        %1955 = vmatprep.subr.mxu0 0.0
        %1956 = vmatpush1.msra.mxu0 0.0
        %1957 = vmatprep.subr.mxu0 0.0
        %1958 = vmatpush1.msra.mxu0 0.0
        %1959 = vmatprep.subr.mxu0 0.0
        %1960 = vmatpush1.msra.mxu0 0.0
        %1961 = vmatprep.subr.mxu0 0.0
        %1962 = vmatpush1.msra.mxu0 0.0
        %1963 = vmatprep.subr.mxu0 0.0
        %1964 = vmatpush1.msra.mxu0 0.0
        %1965 = vmatprep.subr.mxu0 0.0
        %1966 = vmatpush1.msra.mxu0 0.0
        %1967 = vmatprep.subr.mxu0 0.0
        %1968 = vmatpush1.msra.mxu0 0.0
        %1969 = vmatprep.subr.mxu0 0.0
        %1970 = vmatpush1.msra.mxu0 0.0
        %1971 = vmatprep.subr.mxu0 0.0
        %1972 = vmatpush1.msra.mxu0 0.0
        %1973 = vmatprep.subr.mxu0 0.0
        %1974 = vmatpush1.msra.mxu0 0.0
        %1975 = vmatprep.subr.mxu0 0.0
        %1976 = vmatpush1.msra.mxu0 0.0
        %1977 = vmatprep.subr.mxu0 0.0
        %1978 = vmatpush1.msra.mxu0 0.0
        %1979 = vmatprep.subr.mxu0 0.0
        %1980 = vmatpush1.msra.mxu0 0.0
        %1981 = vmatprep.subr.mxu0 0.0
        %1982 = vmatpush1.msra.mxu0 0.0
        %1983 = vmatprep.subr.mxu0 0.0
        %1984 = vmatpush1.msra.mxu0 0.0
        %1985 = vmatprep.subr.mxu0 0.0
        %1986 = vmatpush1.msra.mxu0 0.0
        %1987 = vmatprep.subr.mxu0 0.0
        %1988 = vmatpush1.msra.mxu0 0.0
        %1989 = vmatprep.mubr.f32.mxu0 0.0
        %1990 = vmatmul.mubr.f32.gmra.mrb[0].mxu0 %v336
        %v1991 = vpop.f32.mrb[0].mxu0
        %v1992 = vadd.f32 %v332, %v1991
        %v1993 = vpop.f32.mrb[0].mxu0
        %1994 = vdwg.mxu0
        %v1995 = vmax.f32 %v1992, 0.0
        %v1997 = vcombine.high %v1995, %v1995
        %v1999 = vunpack.c.l.s4 1966171168
        %v2000 = vunpack.c.0.s8 %v1999
        %v2001 = vlaneseq
        %v2002 = vshrl.u32 %v2001, 7
        %v2003 = vsub.s32 %v2000, %v2002
        %v2004 = vrot.slane %v1995, %v2003
        %v2006 = vunpack.c.l.s4 1966171168
        %v2007 = vunpack.c.0.s8 %v2006
        %v2008 = vlaneseq
        %v2009 = vshrl.u32 %v2008, 7
        %v2010 = vsub.s32 %v2007, %v2009
        %v2011 = vrot.slane %v1997, %v2010
        %v2012 = vcombine.high %v2004, %v2004
        %v2013 = vcombine.high %v2011, %v2011
        %v2015 = vunpack.c.l.s4 1966171168
        %v2016 = vunpack.c.0.s8 %v2015
        %v2017 = vlaneseq
        %v2018 = vshrl.u32 %v2017, 7
        %v2019 = vsub.s32 %v2016, %v2018
        %v2020 = vrot.slane %v2004, %v2019
        %v2022 = vunpack.c.l.s4 1966171168
        %v2023 = vunpack.c.0.s8 %v2022
        %v2024 = vlaneseq
        %v2025 = vshrl.u32 %v2024, 7
        %v2026 = vsub.s32 %v2023, %v2025
        %v2027 = vrot.slane %v2011, %v2026
        %v2029 = vunpack.c.l.s4 1966171168
        %v2030 = vunpack.c.0.s8 %v2029
        %v2031 = vlaneseq
        %v2032 = vshrl.u32 %v2031, 7
        %v2033 = vsub.s32 %v2030, %v2032
        %v2034 = vrot.slane %v2012, %v2033
        %v2036 = vunpack.c.l.s4 1966171168
        %v2037 = vunpack.c.0.s8 %v2036
        %v2038 = vlaneseq
        %v2039 = vshrl.u32 %v2038, 7
        %v2040 = vsub.s32 %v2037, %v2039
        %v2041 = vrot.slane %v2013, %v2040
        %v2042 = vcombine.high %v2020, %v2020
        %v2043 = vcombine.high %v2027, %v2027
        %v2044 = vcombine.high %v2034, %v2034
        %v2045 = vcombine.high %v2041, %v2041
        %2054 = vst.msk [vmem:[%s233 + $0x7] sm:$0x1] %vm471, %v2020
        %2055 = vst.msk [vmem:[%s233 + $0xf] sm:$0x1] %vm471, %v2034
        %2056 = vst.msk [vmem:[%s233 + $0x17] sm:$0x1] %vm471, %v2042
        %2057 = vst.msk [vmem:[%s233 + $0x1f] sm:$0x1] %vm471, %v2044
        %2058 = vst.msk [vmem:[%s233 + $0x27] sm:$0x1] %vm471, %v2027
        %2059 = vst.msk [vmem:[%s233 + $0x2f] sm:$0x1] %vm471, %v2041
        %2060 = vst.msk [vmem:[%s233 + $0x37] sm:$0x1] %vm471, %v2043
        %2061 = vst.msk [vmem:[%s233 + $0x3f] sm:$0x1] %vm471, %v2045
        %s2062 = sand.u32 %s134, 1
        %s2063 = scalar_lea.sflag [#allocation4], %s2062
        %s2064 = sand.u32 %s134, 1
        %s2065 = smul.addr %s2064, 64
        %s2066 = scalar_lea.vmem [#allocation5], %s2065
        // Predicated region
        $region41: #{tpu_custom_call.1} parent=35 // pred_check
          %p2067 = pneg %p144
        $region42: #{tpu_custom_call.1} parent=35 // pred_check_branch
          %2069 = sbr.rel (%p2067) target = $region44
        $region43: #{tpu_custom_call.1} parent=35 // pred_region
          %s2071 = ssub.s32 1024, 1024
          %2072 = vsyncadd %s2063, %s2071
          %s2073 = smul.addr %s25, 8
          %s2074 = sadd.s32 %s26, %s2073
          %s2075 = smul.addr %s2074, 128
          %s2076 = scalar_lea.hbm %s4, %s2075
          %s2077 = sshll.u32 %s2066, 4
          %s2078 = int_to_ptr.vmem [resolvable:$true] %s2077
          %2083 = dma.vmem_to_hbm [thread:$0]  %s2078, 1024, %s2076, %s2063, 128, 128, 8
        $region44: #{tpu_custom_call.1} parent=35 // pred_fallthru
          _
      $region36: #{tpu_custom_call.1} parent=5 // pred_fallthru
        _
      %p2084 = scmp.le.s32.totalorder 2, %s16
      // Predicated region
      $region45: #{tpu_custom_call.1} parent=5 // pred_check
        %p2085 = pneg %p2084
      $region46: #{tpu_custom_call.1} parent=5 // pred_check_branch
        %2087 = sbr.rel (%p2085) target = $region48
      $region47: #{tpu_custom_call.1} parent=5 // pred_region
        %s2088 = ssub.s32 %s16, 2
        // Predicated region
        $region49: #{tpu_custom_call.1} parent=47 // pred_check
          %p2089 = pneg %p150
        $region50: #{tpu_custom_call.1} parent=47 // pred_check_branch
          %2091 = sbr.rel (%p2089) target = $region52
        $region51: #{tpu_custom_call.1} parent=47 // pred_region
          %s2092 = sand.u32 %s135, 1
          %s2093 = scalar_lea.sflag [#allocation4], %s2092
          %s2094 = sand.u32 %s135, 1
          %s2095 = smul.addr %s2094, 64
          %s2096 = scalar_lea.vmem [#allocation5], %s2095
          %2097 = dma.done %s2093, 1024
        $region52: #{tpu_custom_call.1} parent=47 // pred_fallthru
          _
      $region48: #{tpu_custom_call.1} parent=5 // pred_fallthru
        _
    $region6: #{tpu_custom_call.1} parent=1 // loop_footer
      %s20 = sadd.s32 1, %s16
    $region7: #{tpu_custom_call.1} parent=1 // loop_footer_branch
      %15 = sbr.rel target = $region3
    $region8: #{tpu_custom_call.1} parent=1 // loop_exit
      _
    %2098 = vsyncpa [#allocation3], 1
    %s2099 = scalar_lea.sflag [#allocation3], 1
    %2100 = vsyncpa %s2099, 1
    %2101 = vsyncpa [#allocation4], 1
    %s2102 = scalar_lea.sflag [#allocation4], 1
    %2103 = vsyncpa %s2102, 1

</llo_original>
